<compile_context>
chip_gen: v7x
topology: tpu7x:2x2x1
jax: 0.10.0
libtpu: 0.0.40
codegen_flags: <defaults>
</compile_context>

<pallas_src>
import functools

import jax
import jax.numpy as jnp
import numpy as np
from jax.experimental import pallas as pl
from jax.experimental.pallas import tpu as pltpu


def _round_up(v, m):
    return ((v + m - 1) // m) * m


def _num_tensorcores_per_chip():
    """2 TensorCores per chip on v7x, 1 on v5e/v6e (best-effort, default 1)."""
    try:
        kind = jax.devices()[0].device_kind.lower()
    except Exception:
        return 1
    return 2 if "7" in kind else 1


def _st_fourier_kernel(x_ref, w_ref, b_ref, o_ref):
    """One batch tile of the fused spatial-temporal Fourier embedding.

    x_ref : (tm, in_features)    VMEM
    w_ref : (in_features, 4*F)   VMEM (resident across the grid)
    b_ref : (1, 4*F)             VMEM (resident across the grid)
    o_ref : (tm, 4*F)            VMEM (lane-dense output tile)
    """
    y = jnp.dot(x_ref[...], w_ref[...], preferred_element_type=jnp.float32)
    o_ref[...] = jnp.sin(y + b_ref[...]).astype(o_ref.dtype)


@functools.partial(jax.jit, static_argnames=("tile_m", "out_dtype"))
def spatial_temporal_fourier_embedding(x, spatial_weight, temporal_weight, *,
                                       tile_m=8192, out_dtype=None):
    n, in_features = x.shape
    out_features = spatial_weight.shape[1]
    assert spatial_weight.shape == (in_features - 1, out_features)
    assert temporal_weight.shape == (1, out_features)
    n_out = 4 * out_features
    out_dtype = x.dtype if out_dtype is None else jnp.dtype(out_dtype)

    f32 = jnp.float32
    ws = spatial_weight.astype(f32)
    wt = temporal_weight.astype(f32)
    zs = jnp.zeros_like(ws)
    zt = jnp.zeros_like(wt)
    # Fused weight: columns = [sin(x_sp@Ws) | cos(x_sp@Ws) | sin(x_t@Wt) | cos(x_t@Wt)]
    w_fused = jnp.concatenate(
        [
            jnp.concatenate([ws, ws, zs, zs], axis=1),  # spatial rows
            jnp.concatenate([zt, zt, wt, wt], axis=1),  # temporal (last) row
        ],
        axis=0,
    )  # (in_features, 4F)
    half_pi = jnp.full((1, out_features), np.pi / 2.0, dtype=f32)
    zero_b = jnp.zeros((1, out_features), dtype=f32)
    bias = jnp.concatenate([zero_b, half_pi, zero_b, half_pi], axis=1)  # (1, 4F)

    # ---- batch-tile selection (multiple of 16 rows) ----
    num_tc = _num_tensorcores_per_chip()
    # Cap so double-buffered x + out tiles (f32 in VMEM) stay under ~24 MiB
    # (safe on v7x's 64 MiB physical / 32 MiB scoped-default VMEM per core).
    bytes_per_row = 4 * (in_features + n_out)
    tm_vmem = max(16, ((24 << 20) // (2 * bytes_per_row)) // 16 * 16)
    tm = max(16, min((tile_m // 16) * 16, tm_vmem))
    tm = min(tm, _round_up(n, 16))          # never larger than one padded batch
    if num_tc >= 2:
        # keep >= 2 grid steps so both v7x TensorCores get work
        tm = min(tm, max(16, _round_up(pl.cdiv(n, 2), 16)))
    steps = pl.cdiv(n, tm)
    if num_tc >= 2 and steps > 1 and steps % 2 == 1:
        # prefer an even grid count so neither core idles on the last step
        tm = max(16, _round_up(pl.cdiv(n, steps + 1), 16))
        steps = pl.cdiv(n, tm)

    cost = pl.CostEstimate(
        flops=2 * n * in_features * n_out,
        transcendentals=n * n_out,
        bytes_accessed=n * (in_features * x.dtype.itemsize
                            + n_out * out_dtype.itemsize)
                       + (w_fused.size + bias.size) * 4,
    )

    return pl.pallas_call(
        _st_fourier_kernel,
        out_shape=jax.ShapeDtypeStruct((n, n_out), out_dtype),
        grid_spec=pltpu.PrefetchScalarGridSpec(
            num_scalar_prefetch=0,
            grid=(steps,),
            in_specs=[
                # x: tile over batch; feature dim equals the full array dim so
                # it is exempt from the 128-lane divisibility rule. The ragged
                # last block is handled by Pallas (OOB writes are masked).
                pl.BlockSpec((tm, in_features), lambda i: (i, 0)),
                # fused weight + bias: tiny, resident for every grid step.
                pl.BlockSpec((in_features, n_out), lambda i: (0, 0)),
                pl.BlockSpec((1, n_out), lambda i: (0, 0)),
            ],
            out_specs=pl.BlockSpec((tm, n_out), lambda i: (i, 0)),
        ),
        compiler_params=pltpu.CompilerParams(
            dimension_semantics=("parallel",),
        ),
        cost_estimate=cost,
    )(x, w_fused, bias)


def reference(x, spatial_weight, temporal_weight):
    y_s = x[:, :-1] @ spatial_weight
    y_t = x[:, -1:] @ temporal_weight
    return jnp.concatenate(
        [jnp.sin(y_s), jnp.cos(y_s), jnp.sin(y_t), jnp.cos(y_t)], axis=-1
    )


if __name__ == "__main__":
    # Module hyper-parameters (synthetic, deterministic init — no checkpoint).
    in_features = 4        # e.g. (x, y, z, t)
    out_features = 32      # -> output width 4 * 32 = 128 (one lane-dense vreg)
    scale = 1.0
    batch = 200            # not a multiple of the tile: exercises ragged block

    key = jax.random.PRNGKey(0)
    k_ws, k_wt, k_x = jax.random.split(key, 3)

    spatial_weight = (
        jax.random.normal(k_ws, (in_features - 1, out_features), dtype=jnp.float32)
        * np.pi * scale
    )
    temporal_weight = (
        jax.random.normal(k_wt, (1, out_features), dtype=jnp.float32)
        * np.pi * scale / 2.0
    )
    x = jax.random.normal(k_x, (batch, in_features), dtype=jnp.float32)

    out = spatial_temporal_fourier_embedding(x, spatial_weight, temporal_weight)
    out = jax.block_until_ready(out)

    ref = reference(x, spatial_weight, temporal_weight)
    np.testing.assert_allclose(np.asarray(out), np.asarray(ref), rtol=1e-5, atol=1e-5)

    print("KERNEL_OK")
</pallas_src>

<mosaic_0001>
module attributes {stable_mosaic.version = 11 : i64} {
  func.func @_st_fourier_kernel(%arg0: i32, %arg1: memref<208x4xf32, #tpu.memory_space<vmem>>, %arg2: memref<4x128xf32, #tpu.memory_space<vmem>>, %arg3: memref<1x128xf32, #tpu.memory_space<vmem>>, %arg4: memref<208x128xf32, #tpu.memory_space<vmem>>) attributes {dimension_semantics = [#tpu.dimension_semantics<parallel>], iteration_bounds = array<i64: 1>, scalar_prefetch = 0 : i64, scratch_operands = 0 : i64, tpu.core_type = #tpu.core_type<tc>, window_params = [{transform_indices = @transform_0, window_bounds = array<i64: 208, 4>}, {pipeline_mode = #tpu.pipeline_mode<synchronous>, transform_indices = @transform_1, window_bounds = array<i64: 4, 128>}, {pipeline_mode = #tpu.pipeline_mode<synchronous>, transform_indices = @transform_2, window_bounds = array<i64: 1, 128>}, {transform_indices = @transform_3, window_bounds = array<i64: 208, 128>}]} {
    %c0 = arith.constant 0 : index
    %c0_0 = arith.constant 0 : index
    %0 = vector.load %arg1[%c0, %c0_0] : memref<208x4xf32, #tpu.memory_space<vmem>>, vector<208x4xf32>
    %c0_1 = arith.constant 0 : index
    %c0_2 = arith.constant 0 : index
    %1 = vector.load %arg2[%c0_1, %c0_2] : memref<4x128xf32, #tpu.memory_space<vmem>>, vector<4x128xf32>
    %cst = arith.constant dense<0.000000e+00> : vector<208x128xf32>
    %2 = tpu.matmul %0, %1, %cst {dimension_numbers = #tpu.dot_dimension_numbers<[1], [0], [0], [1], [0, 0, 1, 1], [], []>} : vector<208x4xf32>, vector<4x128xf32>, vector<208x128xf32> -> vector<208x128xf32>
    %c0_3 = arith.constant 0 : index
    %c0_4 = arith.constant 0 : index
    %3 = vector.load %arg3[%c0_3, %c0_4] : memref<1x128xf32, #tpu.memory_space<vmem>>, vector<1x128xf32>
    %4 = vector.broadcast %3 : vector<1x128xf32> to vector<208x128xf32>
    %5 = arith.addf %2, %4 : vector<208x128xf32>
    %6 = math.sin %5 : vector<208x128xf32>
    %c0_5 = arith.constant 0 : index
    %c0_6 = arith.constant 0 : index
    %7 = vector.load %arg4[%c0_5, %c0_6] : memref<208x128xf32, #tpu.memory_space<vmem>>, vector<208x128xf32>
    tpu.vector_store %arg4[%c0_5, %c0_6], %6 {strides = array<i32>} : memref<208x128xf32, #tpu.memory_space<vmem>>, vector<208x128xf32>,
    return
  }
  func.func @transform_0(%arg0: i32) -> (i32, i32) {
    %c0_i32 = arith.constant 0 : i32
    %c0_i32_0 = arith.constant 0 : i32
    return %arg0, %c0_i32 : i32, i32
  }
  func.func @transform_1(%arg0: i32) -> (i32, i32) {
    %c0_i32 = arith.constant 0 : i32
    %c0_i32_0 = arith.constant 0 : i32
    %c0_i32_1 = arith.constant 0 : i32
    return %c0_i32, %c0_i32_0 : i32, i32
  }
  func.func @transform_2(%arg0: i32) -> (i32, i32) {
    %c0_i32 = arith.constant 0 : i32
    %c0_i32_0 = arith.constant 0 : i32
    %c0_i32_1 = arith.constant 0 : i32
    return %c0_i32, %c0_i32_0 : i32, i32
  }
  func.func @transform_3(%arg0: i32) -> (i32, i32) {
    %c0_i32 = arith.constant 0 : i32
    %c0_i32_0 = arith.constant 0 : i32
    return %arg0, %c0_i32 : i32, i32
  }
}

</mosaic_0001>

<llo_original>
// kernel: spatial_temporal_fourier_embedding.1
$region0: #{spatial_temporal_fourier_embedding.1}
  #allocation0 [shape = 'u32[]', space=smem, size = 0x4, offset = 0x4, fixed_abs, tag = 'smem constant byte address 0x4 - core index']
  #allocation1 [shape = 'u32[144,128]{1,0:T(1,128)}', space=vmem, size = 0x12000, scoped, tag = 'internal scratch']
  %s0 = inlined_call_operand.vmem [shape: f32[200,4], index: 0, kind: input, shape index: {}]
  %s1 = inlined_call_operand.vmem [shape: f32[4,128], index: 1, kind: input, shape index: {}]
  %s2 = inlined_call_operand.vmem [shape: f32[1,128], index: 2, kind: input, shape index: {}]
  %s3 = inlined_call_operand.hbm [shape: f32[200,128], index: 3, kind: output, shape index: {}]
  %s4 = sld [smem:[#allocation0]]
  $region22: #{spatial_temporal_fourier_embedding.1} parent=0
    _
  %s6 = ssub.s32 1, %s4
  %s7 = scalar_select 0, %s6, %s4
  $region1: #{spatial_temporal_fourier_embedding.1} parent=0
    #allocation2 [shape = 'u8[106496]{0}', space=vmem, size = 0x1a000, scoped, tag = 'output window, operand 0, single buffered']
    #allocation3 [shape = 's32[1]{0}', space=sflag, size = 0x4, scoped, tag = 'scoped memory for spatial_temporal_fourier_embedding.1']
    %8 = vsyncpa [#allocation3], 0
    // Predicated region
    $region2: #{spatial_temporal_fourier_embedding.1} parent=1 // pred_check
      _
    $region3: #{spatial_temporal_fourier_embedding.1} parent=1 // pred_check_branch
      %10 = sbr.rel (0) target = $region5
    $region4: #{spatial_temporal_fourier_embedding.1} parent=1 // pred_region
      _
    $region5: #{spatial_temporal_fourier_embedding.1} parent=1 // pred_fallthru
      _
    // Predicated region
    $region6: #{spatial_temporal_fourier_embedding.1} parent=1 // pred_check
      _
    $region7: #{spatial_temporal_fourier_embedding.1} parent=1 // pred_check_branch
      %12 = sbr.rel (0) target = $region9
    $region8: #{spatial_temporal_fourier_embedding.1} parent=1 // pred_region
      _
    $region9: #{spatial_temporal_fourier_embedding.1} parent=1 // pred_fallthru
      _
    // Predicated region
    $region10: #{spatial_temporal_fourier_embedding.1} parent=1 // pred_check
      _
    $region11: #{spatial_temporal_fourier_embedding.1} parent=1 // pred_check_branch
      %14 = sbr.rel (0) target = $region13
    $region12: #{spatial_temporal_fourier_embedding.1} parent=1 // pred_region
      _
    $region13: #{spatial_temporal_fourier_embedding.1} parent=1 // pred_fallthru
      _
    %v15 = vld [vmem:[%s0] sm:$0xff]
    %v16 = vld [vmem:[%s0 + $0x8] sm:$0xff]
    %v17 = vld [vmem:[%s0 + $0x10] sm:$0xff]
    %v18 = vld [vmem:[%s0 + $0x18] sm:$0xff]
    %v19 = vld [vmem:[%s0 + $0x20] sm:$0xff]
    %v20 = vld [vmem:[%s0 + $0x28] sm:$0xff]
    %v21 = vld [vmem:[%s0 + $0x30] sm:$0xff]
    %v22 = vld [vmem:[%s0 + $0x38] sm:$0xff]
    %v23 = vld [vmem:[%s0 + $0x40] sm:$0xff]
    %v24 = vld [vmem:[%s0 + $0x48] sm:$0xff]
    %v25 = vld [vmem:[%s0 + $0x50] sm:$0xff]
    %v26 = vld [vmem:[%s0 + $0x58] sm:$0xff]
    %v27 = vld [vmem:[%s0 + $0x60] sm:$0xff]
    %v28 = vld [vmem:[%s0 + $0x68] sm:$0xff]
    %v29 = vld [vmem:[%s0 + $0x70] sm:$0xff]
    %v30 = vld [vmem:[%s0 + $0x78] sm:$0xff]
    %v31 = vld [vmem:[%s0 + $0x80] sm:$0xff]
    %v32 = vld [vmem:[%s0 + $0x88] sm:$0xff]
    %v33 = vld [vmem:[%s0 + $0x90] sm:$0xff]
    %v34 = vld [vmem:[%s0 + $0x98] sm:$0xff]
    %v35 = vld [vmem:[%s0 + $0xa0] sm:$0xff]
    %v36 = vld [vmem:[%s0 + $0xa8] sm:$0xff]
    %v37 = vld [vmem:[%s0 + $0xb0] sm:$0xff]
    %v38 = vld [vmem:[%s0 + $0xb8] sm:$0xff]
    %v39 = vld [vmem:[%s0 + $0xc0] sm:$0xff]
    %v40 = vld [vmem:[%s0 + $0xc8] sm:$0xff]
    %v41 = vld [vmem:[%s1] sm:$0xf]
    %v42 = vld [vmem:[%s2] sm:$0x1]
    %v44 = vlaneseq
    %v45 = vshrl.u32 %v44, 7
    %v46 = vsub.s32 0, %v45
    %v47 = vrot.slane %v42, %v46
    %vm49 = vcmask 31744
    %v51 = vsel %vm49, %v15, 0
    %v54 = vsel %vm49, %v16, 0
    %v57 = vsel %vm49, %v17, 0
    %v60 = vsel %vm49, %v18, 0
    %v63 = vsel %vm49, %v19, 0
    %v66 = vsel %vm49, %v20, 0
    %v69 = vsel %vm49, %v21, 0
    %v72 = vsel %vm49, %v22, 0
    %v75 = vsel %vm49, %v23, 0
    %v78 = vsel %vm49, %v24, 0
    %v81 = vsel %vm49, %v25, 0
    %v84 = vsel %vm49, %v26, 0
    %v87 = vsel %vm49, %v27, 0
    %v90 = vsel %vm49, %v28, 0
    %v93 = vsel %vm49, %v29, 0
    %v96 = vsel %vm49, %v30, 0
    %v99 = vsel %vm49, %v31, 0
    %v102 = vsel %vm49, %v32, 0
    %v105 = vsel %vm49, %v33, 0
    %v108 = vsel %vm49, %v34, 0
    %v111 = vsel %vm49, %v35, 0
    %v114 = vsel %vm49, %v36, 0
    %v117 = vsel %vm49, %v37, 0
    %v120 = vsel %vm49, %v38, 0
    %v123 = vsel %vm49, %v39, 0
    %v126 = vsel %vm49, %v40, 0
    %vm128 = vcmask 1043456
    %v130 = vsel %vm128, %v41, 0
    %132 = vmatprep.subr.mxu0 0.0
    %133 = vmatpush1.msra.mxu0 %v130
    %134 = vmatprep.subr.mxu0 0.0
    %135 = vmatpush1.msra.mxu0 0.0
    %136 = vmatprep.subr.mxu0 0.0
    %137 = vmatpush1.msra.mxu0 0.0
    %138 = vmatprep.subr.mxu0 0.0
    %139 = vmatpush1.msra.mxu0 0.0
    %140 = vmatprep.subr.mxu0 0.0
    %141 = vmatpush1.msra.mxu0 0.0
    %142 = vmatprep.subr.mxu0 0.0
    %143 = vmatpush1.msra.mxu0 0.0
    %144 = vmatprep.subr.mxu0 0.0
    %145 = vmatpush1.msra.mxu0 0.0
    %146 = vmatprep.subr.mxu0 0.0
    %147 = vmatpush1.msra.mxu0 0.0
    %148 = vmatprep.subr.mxu0 0.0
    %149 = vmatpush1.msra.mxu0 0.0
    %150 = vmatprep.subr.mxu0 0.0
    %151 = vmatpush1.msra.mxu0 0.0
    %152 = vmatprep.subr.mxu0 0.0
    %153 = vmatpush1.msra.mxu0 0.0
    %154 = vmatprep.subr.mxu0 0.0
    %155 = vmatpush1.msra.mxu0 0.0
    %156 = vmatprep.subr.mxu0 0.0
    %157 = vmatpush1.msra.mxu0 0.0
    %158 = vmatprep.subr.mxu0 0.0
    %159 = vmatpush1.msra.mxu0 0.0
    %160 = vmatprep.subr.mxu0 0.0
    %161 = vmatpush1.msra.mxu0 0.0
    %162 = vmatprep.subr.mxu0 0.0
    %163 = vmatpush1.msra.mxu0 0.0
    %164 = vmatprep.subr.mxu0 0.0
    %165 = vmatpush1.msra.mxu0 0.0
    %166 = vmatprep.subr.mxu0 0.0
    %167 = vmatpush1.msra.mxu0 0.0
    %168 = vmatprep.subr.mxu0 0.0
    %169 = vmatpush1.msra.mxu0 0.0
    %170 = vmatprep.subr.mxu0 0.0
    %171 = vmatpush1.msra.mxu0 0.0
    %172 = vmatprep.subr.mxu0 0.0
    %173 = vmatpush1.msra.mxu0 0.0
    %174 = vmatprep.subr.mxu0 0.0
    %175 = vmatpush1.msra.mxu0 0.0
    %176 = vmatprep.subr.mxu0 0.0
    %177 = vmatpush1.msra.mxu0 0.0
    %178 = vmatprep.subr.mxu0 0.0
    %179 = vmatpush1.msra.mxu0 0.0
    %180 = vmatprep.subr.mxu0 0.0
    %181 = vmatpush1.msra.mxu0 0.0
    %182 = vmatprep.subr.mxu0 0.0
    %183 = vmatpush1.msra.mxu0 0.0
    %184 = vmatprep.subr.mxu0 0.0
    %185 = vmatpush1.msra.mxu0 0.0
    %186 = vmatprep.subr.mxu0 0.0
    %187 = vmatpush1.msra.mxu0 0.0
    %188 = vmatprep.subr.mxu0 0.0
    %189 = vmatpush1.msra.mxu0 0.0
    %190 = vmatprep.subr.mxu0 0.0
    %191 = vmatpush1.msra.mxu0 0.0
    %192 = vmatprep.subr.mxu0 0.0
    %193 = vmatpush1.msra.mxu0 0.0
    %194 = vmatprep.subr.mxu0 0.0
    %195 = vmatpush1.msra.mxu0 0.0
    %196 = vmatprep.mubr.f32.mxu0 0.0
    %197 = vmatmul.mubr.f32.gmra.mrb[0].mxu0 %v51
    %v198 = vpop.f32.mrb[0].mxu0
    %v199 = vadd.f32 %v47, %v198
    %v200 = vpop.f32.mrb[0].mxu0
    %201 = vmatprep.mubr.f32.mxu0 0.0
    %202 = vmatmul.mubr.f32.gmra.mrb[0].mxu0 %v54
    %v203 = vpop.f32.mrb[0].mxu0
    %v204 = vadd.f32 %v47, %v203
    %v205 = vpop.f32.mrb[0].mxu0
    %206 = vmatprep.mubr.f32.mxu0 0.0
    %207 = vmatmul.mubr.f32.gmra.mrb[0].mxu0 %v57
    %v208 = vpop.f32.mrb[0].mxu0
    %v209 = vadd.f32 %v47, %v208
    %v210 = vpop.f32.mrb[0].mxu0
    %211 = vmatprep.mubr.f32.mxu0 0.0
    %212 = vmatmul.mubr.f32.gmra.mrb[0].mxu0 %v60
    %v213 = vpop.f32.mrb[0].mxu0
    %v214 = vadd.f32 %v47, %v213
    %v215 = vpop.f32.mrb[0].mxu0
    %216 = vmatprep.mubr.f32.mxu0 0.0
    %217 = vmatmul.mubr.f32.gmra.mrb[0].mxu0 %v63
    %v218 = vpop.f32.mrb[0].mxu0
    %v219 = vadd.f32 %v47, %v218
    %v220 = vpop.f32.mrb[0].mxu0
    %221 = vmatprep.mubr.f32.mxu0 0.0
    %222 = vmatmul.mubr.f32.gmra.mrb[0].mxu0 %v66
    %v223 = vpop.f32.mrb[0].mxu0
    %v224 = vadd.f32 %v47, %v223
    %v225 = vpop.f32.mrb[0].mxu0
    %226 = vmatprep.mubr.f32.mxu0 0.0
    %227 = vmatmul.mubr.f32.gmra.mrb[0].mxu0 %v69
    %v228 = vpop.f32.mrb[0].mxu0
    %v229 = vadd.f32 %v47, %v228
    %v230 = vpop.f32.mrb[0].mxu0
    %231 = vmatprep.mubr.f32.mxu0 0.0
    %232 = vmatmul.mubr.f32.gmra.mrb[0].mxu0 %v72
    %v233 = vpop.f32.mrb[0].mxu0
    %v234 = vadd.f32 %v47, %v233
    %v235 = vpop.f32.mrb[0].mxu0
    %236 = vmatprep.mubr.f32.mxu0 0.0
    %237 = vmatmul.mubr.f32.gmra.mrb[0].mxu0 %v75
    %v238 = vpop.f32.mrb[0].mxu0
    %v239 = vadd.f32 %v47, %v238
    %v240 = vpop.f32.mrb[0].mxu0
    %241 = vmatprep.mubr.f32.mxu0 0.0
    %242 = vmatmul.mubr.f32.gmra.mrb[0].mxu0 %v78
    %v243 = vpop.f32.mrb[0].mxu0
    %v244 = vadd.f32 %v47, %v243
    %v245 = vpop.f32.mrb[0].mxu0
    %246 = vmatprep.mubr.f32.mxu0 0.0
    %247 = vmatmul.mubr.f32.gmra.mrb[0].mxu0 %v81
    %v248 = vpop.f32.mrb[0].mxu0
    %v249 = vadd.f32 %v47, %v248
    %v250 = vpop.f32.mrb[0].mxu0
    %251 = vmatprep.mubr.f32.mxu0 0.0
    %252 = vmatmul.mubr.f32.gmra.mrb[0].mxu0 %v84
    %v253 = vpop.f32.mrb[0].mxu0
    %v254 = vadd.f32 %v47, %v253
    %v255 = vpop.f32.mrb[0].mxu0
    %256 = vmatprep.mubr.f32.mxu0 0.0
    %257 = vmatmul.mubr.f32.gmra.mrb[0].mxu0 %v87
    %v258 = vpop.f32.mrb[0].mxu0
    %v259 = vadd.f32 %v47, %v258
    %v260 = vpop.f32.mrb[0].mxu0
    %261 = vmatprep.mubr.f32.mxu0 0.0
    %262 = vmatmul.mubr.f32.gmra.mrb[0].mxu0 %v90
    %v263 = vpop.f32.mrb[0].mxu0
    %v264 = vadd.f32 %v47, %v263
    %v265 = vpop.f32.mrb[0].mxu0
    %266 = vmatprep.mubr.f32.mxu0 0.0
    %267 = vmatmul.mubr.f32.gmra.mrb[0].mxu0 %v93
    %v268 = vpop.f32.mrb[0].mxu0
    %v269 = vadd.f32 %v47, %v268
    %v270 = vpop.f32.mrb[0].mxu0
    %271 = vmatprep.mubr.f32.mxu0 0.0
    %272 = vmatmul.mubr.f32.gmra.mrb[0].mxu0 %v96
    %v273 = vpop.f32.mrb[0].mxu0
    %v274 = vadd.f32 %v47, %v273
    %v275 = vpop.f32.mrb[0].mxu0
    %276 = vmatprep.mubr.f32.mxu0 0.0
    %277 = vmatmul.mubr.f32.gmra.mrb[0].mxu0 %v99
    %v278 = vpop.f32.mrb[0].mxu0
    %v279 = vadd.f32 %v47, %v278
    %v280 = vpop.f32.mrb[0].mxu0
    %281 = vmatprep.mubr.f32.mxu0 0.0
    %282 = vmatmul.mubr.f32.gmra.mrb[0].mxu0 %v102
    %v283 = vpop.f32.mrb[0].mxu0
    %v284 = vadd.f32 %v47, %v283
    %v285 = vpop.f32.mrb[0].mxu0
    %286 = vmatprep.mubr.f32.mxu0 0.0
    %287 = vmatmul.mubr.f32.gmra.mrb[0].mxu0 %v105
    %v288 = vpop.f32.mrb[0].mxu0
    %v289 = vadd.f32 %v47, %v288
    %v290 = vpop.f32.mrb[0].mxu0
    %291 = vmatprep.mubr.f32.mxu0 0.0
    %292 = vmatmul.mubr.f32.gmra.mrb[0].mxu0 %v108
    %v293 = vpop.f32.mrb[0].mxu0
    %v294 = vadd.f32 %v47, %v293
    %v295 = vpop.f32.mrb[0].mxu0
    %296 = vmatprep.mubr.f32.mxu0 0.0
    %297 = vmatmul.mubr.f32.gmra.mrb[0].mxu0 %v111
    %v298 = vpop.f32.mrb[0].mxu0
    %v299 = vadd.f32 %v47, %v298
    %v300 = vpop.f32.mrb[0].mxu0
    %301 = vmatprep.mubr.f32.mxu0 0.0
    %302 = vmatmul.mubr.f32.gmra.mrb[0].mxu0 %v114
    %v303 = vpop.f32.mrb[0].mxu0
    %v304 = vadd.f32 %v47, %v303
    %v305 = vpop.f32.mrb[0].mxu0
    %306 = vmatprep.mubr.f32.mxu0 0.0
    %307 = vmatmul.mubr.f32.gmra.mrb[0].mxu0 %v117
    %v308 = vpop.f32.mrb[0].mxu0
    %v309 = vadd.f32 %v47, %v308
    %v310 = vpop.f32.mrb[0].mxu0
    %311 = vmatprep.mubr.f32.mxu0 0.0
    %312 = vmatmul.mubr.f32.gmra.mrb[0].mxu0 %v120
    %v313 = vpop.f32.mrb[0].mxu0
    %v314 = vadd.f32 %v47, %v313
    %v315 = vpop.f32.mrb[0].mxu0
    %316 = vmatprep.mubr.f32.mxu0 0.0
    %317 = vmatmul.mubr.f32.gmra.mrb[0].mxu0 %v123
    %v318 = vpop.f32.mrb[0].mxu0
    %v319 = vadd.f32 %v47, %v318
    %v320 = vpop.f32.mrb[0].mxu0
    %321 = vmatprep.mubr.f32.mxu0 0.0
    %322 = vmatmul.mubr.f32.gmra.mrb[0].mxu0 %v126
    %v323 = vpop.f32.mrb[0].mxu0
    %v324 = vadd.f32 %v47, %v323
    %v325 = vpop.f32.mrb[0].mxu0
    %326 = vdwg.mxu0
    %v327 = vand.u32 2147483647, %v199
    %vm328 = vcmp.le.f32.partialorder %v327, 0.7853982
    %vm329 = vcmp.lt.s32.totalorder %v199, 0
    %v330 = vand.u32 %v199, 2139095040
    %v331 = vshrl.u32 %v330, 23
    %v332 = vsub.s32 %v331, 127
    %v333 = vand.u32 2147483647, %v199
    %v334 = vand.u32 %v333, 8388607
    %v335 = vor.u32 %v334, 8388608
    %v336 = vsub.s32 0, %v335
    %v337 = vadd.s32 %v332, 1
    %vm338 = vcmp.gt.s32.totalorder %v337, 0
    %v339 = vsel %vm338, %v337, 0
    %v340 = vshrl.u32 %v339, 5
    %v341 = vand.u32 %v339, 31
    %v342 = vsub.s32 32, %v341
    %v343 = vshrl.u32 683565275, %v342
    %v344 = vshll.u32 683565275, %v341
    %v345 = vshrl.u32 2475754826, %v342
    %v346 = vor.u32 %v344, %v345
    %v347 = vshll.u32 2475754826, %v341
    %v348 = vshrl.u32 2131351028, %v342
    %v349 = vor.u32 %v347, %v348
    %v350 = vshll.u32 2131351028, %v341
    %v351 = vshrl.u32 2102212464, %v342
    %v352 = vor.u32 %v350, %v351
    %v353 = vshll.u32 2102212464, %v341
    %v354 = vshrl.u32 920167782, %v342
    %v355 = vor.u32 %v353, %v354
    %v356 = vshll.u32 920167782, %v341
    %v357 = vshrl.u32 1326507024, %v342
    %v358 = vor.u32 %v356, %v357
    %vm359 = vcmp.lt.s32.totalorder %v340, 1
    %vm360 = vcmp.lt.s32.totalorder %v340, 2
    %vm361 = vcmp.lt.s32.totalorder %v340, 3
    %vm362 = vcmp.lt.s32.totalorder %v340, 4
    %v363 = vsel %vm359, %v343, %v346
    %v364 = vsel %vm362, %v352, 2102212464
    %v365 = vsel %vm361, %v349, %v364
    %v366 = vsel %vm360, %v363, %v365
    %v367 = vsel %vm359, %v346, %v349
    %v368 = vsel %vm362, %v355, 920167782
    %v369 = vsel %vm361, %v352, %v368
    %v370 = vsel %vm360, %v367, %v369
    %v371 = vsel %vm359, %v349, %v352
    %v372 = vsel %vm362, %v358, 1326507024
    %v373 = vsel %vm361, %v355, %v372
    %v374 = vsel %vm360, %v371, %v373
    %v375 = vshll.u32 %v335, 8
    %v376 = vmul.u32.u64.compose %v375, %v374
    %v377 = vextract.low.u32 %v376
    %v378 = vextract.high.u32 %v376
    %v379 = vmul.u32.u64.compose %v375, %v370
    %v380 = vextract.low.u32 %v379
    %v381 = vextract.high.u32 %v379
    %v382 = vmul.u32 %v375, %v366
    %v383 = vadd.s32 %v378, %v380
    %vm384 = vc.u32 %v378, %v380
    %v385 = vadd.s32 %v381, 1
    %v386 = vsel %vm384, %v385, %v381
    %v387 = vadd.s32 %v382, %v386
    %v388 = vadd.s32 %v387, 536870912
    %v389 = vshrl.u32 %v388, 30
    %v390 = vshll.u32 %v389, 30
    %v391 = vsub.s32 %v387, %v390
    %vm392 = vcmp.lt.s32.totalorder %v391, 0
    %v393 = vsub.s32 0, %v391
    %v394 = vsel %vm392, %v393, %v391
    %v395 = vclz %v394
    %v396 = vsub.s32 %v395, 2
    %vm397 = vcmp.gt.s32.totalorder 0, %v396
    %v398 = vsel %vm397, 0, %v396
    %v399 = vsub.s32 32, %v398
    %v400 = vshll.u32 %v391, %v398
    %v401 = vshrl.u32 %v383, %v399
    %v402 = vor.u32 %v400, %v401
    %v403 = vsub.s32 4294967266, %v398
    %v404 = vadd.s32 %v403, 127
    %v405 = vshll.u32 %v404, 23
    %v406 = vor.u32 4788187, %v405
    %v407 = vand.u32 2147483647, %v406
    %v409 = vcvt.s32.f32 %v402
    %v410 = vmul.f32 %v409, %v407
    %v411 = vxor.u32 %v410, 2147483648
    %v412 = vsel %vm329, %v411, %v410
    %v413 = vsub.s32 4, %v389
    %v414 = vsel %vm329, %v413, %v389
    %v415 = vsel %vm328, %v199, %v412
    %v416 = vsel %vm328, 0, %v414
    %v417 = vcosq.f32.pop %v415
    %v418 = vsinq.f32.pop %v415
    %vm419 = vweird.f32 %v199
    %v420 = vadd.s32 %v416, 3
    %v421 = vand.u32 %v420, 3
    %vm422 = vcmp.lt.s32.totalorder %v421, 2
    %vm423 = vcmp.eq.s32.totalorder %v421, 0
    %v424 = vxor.u32 %v418, 2147483648
    %v425 = vsel %vm423, %v417, %v424
    %vm426 = vcmp.eq.s32.totalorder %v421, 2
    %v427 = vxor.u32 %v417, 2147483648
    %v428 = vsel %vm426, %v427, %v418
    %v429 = vsel %vm422, %v425, %v428
    %v430 = vsel %vm419, nan, %v429
    %v431 = vand.u32 2147483647, %v204
    %vm432 = vcmp.le.f32.partialorder %v431, 0.7853982
    %vm433 = vcmp.lt.s32.totalorder %v204, 0
    %v434 = vand.u32 %v204, 2139095040
    %v435 = vshrl.u32 %v434, 23
    %v436 = vsub.s32 %v435, 127
    %v437 = vand.u32 2147483647, %v204
    %v438 = vand.u32 %v437, 8388607
    %v439 = vor.u32 %v438, 8388608
    %v440 = vsub.s32 0, %v439
    %v441 = vadd.s32 %v436, 1
    %vm442 = vcmp.gt.s32.totalorder %v441, 0
    %v443 = vsel %vm442, %v441, 0
    %v444 = vshrl.u32 %v443, 5
    %v445 = vand.u32 %v443, 31
    %v446 = vsub.s32 32, %v445
    %v447 = vshrl.u32 683565275, %v446
    %v448 = vshll.u32 683565275, %v445
    %v449 = vshrl.u32 2475754826, %v446
    %v450 = vor.u32 %v448, %v449
    %v451 = vshll.u32 2475754826, %v445
    %v452 = vshrl.u32 2131351028, %v446
    %v453 = vor.u32 %v451, %v452
    %v454 = vshll.u32 2131351028, %v445
    %v455 = vshrl.u32 2102212464, %v446
    %v456 = vor.u32 %v454, %v455
    %v457 = vshll.u32 2102212464, %v445
    %v458 = vshrl.u32 920167782, %v446
    %v459 = vor.u32 %v457, %v458
    %v460 = vshll.u32 920167782, %v445
    %v461 = vshrl.u32 1326507024, %v446
    %v462 = vor.u32 %v460, %v461
    %vm463 = vcmp.lt.s32.totalorder %v444, 1
    %vm464 = vcmp.lt.s32.totalorder %v444, 2
    %vm465 = vcmp.lt.s32.totalorder %v444, 3
    %vm466 = vcmp.lt.s32.totalorder %v444, 4
    %v467 = vsel %vm463, %v447, %v450
    %v468 = vsel %vm466, %v456, 2102212464
    %v469 = vsel %vm465, %v453, %v468
    %v470 = vsel %vm464, %v467, %v469
    %v471 = vsel %vm463, %v450, %v453
    %v472 = vsel %vm466, %v459, 920167782
    %v473 = vsel %vm465, %v456, %v472
    %v474 = vsel %vm464, %v471, %v473
    %v475 = vsel %vm463, %v453, %v456
    %v476 = vsel %vm466, %v462, 1326507024
    %v477 = vsel %vm465, %v459, %v476
    %v478 = vsel %vm464, %v475, %v477
    %v479 = vshll.u32 %v439, 8
    %v480 = vmul.u32.u64.compose %v479, %v478
    %v481 = vextract.low.u32 %v480
    %v482 = vextract.high.u32 %v480
    %v483 = vmul.u32.u64.compose %v479, %v474
    %v484 = vextract.low.u32 %v483
    %v485 = vextract.high.u32 %v483
    %v486 = vmul.u32 %v479, %v470
    %v487 = vadd.s32 %v482, %v484
    %vm488 = vc.u32 %v482, %v484
    %v489 = vadd.s32 %v485, 1
    %v490 = vsel %vm488, %v489, %v485
    %v491 = vadd.s32 %v486, %v490
    %v492 = vadd.s32 %v491, 536870912
    %v493 = vshrl.u32 %v492, 30
    %v494 = vshll.u32 %v493, 30
    %v495 = vsub.s32 %v491, %v494
    %vm496 = vcmp.lt.s32.totalorder %v495, 0
    %v497 = vsub.s32 0, %v495
    %v498 = vsel %vm496, %v497, %v495
    %v499 = vclz %v498
    %v500 = vsub.s32 %v499, 2
    %vm501 = vcmp.gt.s32.totalorder 0, %v500
    %v502 = vsel %vm501, 0, %v500
    %v503 = vsub.s32 32, %v502
    %v504 = vshll.u32 %v495, %v502
    %v505 = vshrl.u32 %v487, %v503
    %v506 = vor.u32 %v504, %v505
    %v507 = vsub.s32 4294967266, %v502
    %v508 = vadd.s32 %v507, 127
    %v509 = vshll.u32 %v508, 23
    %v510 = vor.u32 4788187, %v509
    %v511 = vand.u32 2147483647, %v510
    %v513 = vcvt.s32.f32 %v506
    %v514 = vmul.f32 %v513, %v511
    %v515 = vxor.u32 %v514, 2147483648
    %v516 = vsel %vm433, %v515, %v514
    %v517 = vsub.s32 4, %v493
    %v518 = vsel %vm433, %v517, %v493
    %v519 = vsel %vm432, %v204, %v516
    %v520 = vsel %vm432, 0, %v518
    %v521 = vcosq.f32.pop %v519
    %v522 = vsinq.f32.pop %v519
    %vm523 = vweird.f32 %v204
    %v524 = vadd.s32 %v520, 3
    %v525 = vand.u32 %v524, 3
    %vm526 = vcmp.lt.s32.totalorder %v525, 2
    %vm527 = vcmp.eq.s32.totalorder %v525, 0
    %v528 = vxor.u32 %v522, 2147483648
    %v529 = vsel %vm527, %v521, %v528
    %vm530 = vcmp.eq.s32.totalorder %v525, 2
    %v531 = vxor.u32 %v521, 2147483648
    %v532 = vsel %vm530, %v531, %v522
    %v533 = vsel %vm526, %v529, %v532
    %v534 = vsel %vm523, nan, %v533
    %v535 = vand.u32 2147483647, %v209
    %vm536 = vcmp.le.f32.partialorder %v535, 0.7853982
    %vm537 = vcmp.lt.s32.totalorder %v209, 0
    %v538 = vand.u32 %v209, 2139095040
    %v539 = vshrl.u32 %v538, 23
    %v540 = vsub.s32 %v539, 127
    %v541 = vand.u32 2147483647, %v209
    %v542 = vand.u32 %v541, 8388607
    %v543 = vor.u32 %v542, 8388608
    %v544 = vsub.s32 0, %v543
    %v545 = vadd.s32 %v540, 1
    %vm546 = vcmp.gt.s32.totalorder %v545, 0
    %v547 = vsel %vm546, %v545, 0
    %v548 = vshrl.u32 %v547, 5
    %v549 = vand.u32 %v547, 31
    %v550 = vsub.s32 32, %v549
    %v551 = vshrl.u32 683565275, %v550
    %v552 = vshll.u32 683565275, %v549
    %v553 = vshrl.u32 2475754826, %v550
    %v554 = vor.u32 %v552, %v553
    %v555 = vshll.u32 2475754826, %v549
    %v556 = vshrl.u32 2131351028, %v550
    %v557 = vor.u32 %v555, %v556
    %v558 = vshll.u32 2131351028, %v549
    %v559 = vshrl.u32 2102212464, %v550
    %v560 = vor.u32 %v558, %v559
    %v561 = vshll.u32 2102212464, %v549
    %v562 = vshrl.u32 920167782, %v550
    %v563 = vor.u32 %v561, %v562
    %v564 = vshll.u32 920167782, %v549
    %v565 = vshrl.u32 1326507024, %v550
    %v566 = vor.u32 %v564, %v565
    %vm567 = vcmp.lt.s32.totalorder %v548, 1
    %vm568 = vcmp.lt.s32.totalorder %v548, 2
    %vm569 = vcmp.lt.s32.totalorder %v548, 3
    %vm570 = vcmp.lt.s32.totalorder %v548, 4
    %v571 = vsel %vm567, %v551, %v554
    %v572 = vsel %vm570, %v560, 2102212464
    %v573 = vsel %vm569, %v557, %v572
    %v574 = vsel %vm568, %v571, %v573
    %v575 = vsel %vm567, %v554, %v557
    %v576 = vsel %vm570, %v563, 920167782
    %v577 = vsel %vm569, %v560, %v576
    %v578 = vsel %vm568, %v575, %v577
    %v579 = vsel %vm567, %v557, %v560
    %v580 = vsel %vm570, %v566, 1326507024
    %v581 = vsel %vm569, %v563, %v580
    %v582 = vsel %vm568, %v579, %v581
    %v583 = vshll.u32 %v543, 8
    %v584 = vmul.u32.u64.compose %v583, %v582
    %v585 = vextract.low.u32 %v584
    %v586 = vextract.high.u32 %v584
    %v587 = vmul.u32.u64.compose %v583, %v578
    %v588 = vextract.low.u32 %v587
    %v589 = vextract.high.u32 %v587
    %v590 = vmul.u32 %v583, %v574
    %v591 = vadd.s32 %v586, %v588
    %vm592 = vc.u32 %v586, %v588
    %v593 = vadd.s32 %v589, 1
    %v594 = vsel %vm592, %v593, %v589
    %v595 = vadd.s32 %v590, %v594
    %v596 = vadd.s32 %v595, 536870912
    %v597 = vshrl.u32 %v596, 30
    %v598 = vshll.u32 %v597, 30
    %v599 = vsub.s32 %v595, %v598
    %vm600 = vcmp.lt.s32.totalorder %v599, 0
    %v601 = vsub.s32 0, %v599
    %v602 = vsel %vm600, %v601, %v599
    %v603 = vclz %v602
    %v604 = vsub.s32 %v603, 2
    %vm605 = vcmp.gt.s32.totalorder 0, %v604
    %v606 = vsel %vm605, 0, %v604
    %v607 = vsub.s32 32, %v606
    %v608 = vshll.u32 %v599, %v606
    %v609 = vshrl.u32 %v591, %v607
    %v610 = vor.u32 %v608, %v609
    %v611 = vsub.s32 4294967266, %v606
    %v612 = vadd.s32 %v611, 127
    %v613 = vshll.u32 %v612, 23
    %v614 = vor.u32 4788187, %v613
    %v615 = vand.u32 2147483647, %v614
    %v617 = vcvt.s32.f32 %v610
    %v618 = vmul.f32 %v617, %v615
    %v619 = vxor.u32 %v618, 2147483648
    %v620 = vsel %vm537, %v619, %v618
    %v621 = vsub.s32 4, %v597
    %v622 = vsel %vm537, %v621, %v597
    %v623 = vsel %vm536, %v209, %v620
    %v624 = vsel %vm536, 0, %v622
    %v625 = vcosq.f32.pop %v623
    %v626 = vsinq.f32.pop %v623
    %vm627 = vweird.f32 %v209
    %v628 = vadd.s32 %v624, 3
    %v629 = vand.u32 %v628, 3
    %vm630 = vcmp.lt.s32.totalorder %v629, 2
    %vm631 = vcmp.eq.s32.totalorder %v629, 0
    %v632 = vxor.u32 %v626, 2147483648
    %v633 = vsel %vm631, %v625, %v632
    %vm634 = vcmp.eq.s32.totalorder %v629, 2
    %v635 = vxor.u32 %v625, 2147483648
    %v636 = vsel %vm634, %v635, %v626
    %v637 = vsel %vm630, %v633, %v636
    %v638 = vsel %vm627, nan, %v637
    %v639 = vand.u32 2147483647, %v214
    %vm640 = vcmp.le.f32.partialorder %v639, 0.7853982
    %vm641 = vcmp.lt.s32.totalorder %v214, 0
    %v642 = vand.u32 %v214, 2139095040
    %v643 = vshrl.u32 %v642, 23
    %v644 = vsub.s32 %v643, 127
    %v645 = vand.u32 2147483647, %v214
    %v646 = vand.u32 %v645, 8388607
    %v647 = vor.u32 %v646, 8388608
    %v648 = vsub.s32 0, %v647
    %v649 = vadd.s32 %v644, 1
    %vm650 = vcmp.gt.s32.totalorder %v649, 0
    %v651 = vsel %vm650, %v649, 0
    %v652 = vshrl.u32 %v651, 5
    %v653 = vand.u32 %v651, 31
    %v654 = vsub.s32 32, %v653
    %v655 = vshrl.u32 683565275, %v654
    %v656 = vshll.u32 683565275, %v653
    %v657 = vshrl.u32 2475754826, %v654
    %v658 = vor.u32 %v656, %v657
    %v659 = vshll.u32 2475754826, %v653
    %v660 = vshrl.u32 2131351028, %v654
    %v661 = vor.u32 %v659, %v660
    %v662 = vshll.u32 2131351028, %v653
    %v663 = vshrl.u32 2102212464, %v654
    %v664 = vor.u32 %v662, %v663
    %v665 = vshll.u32 2102212464, %v653
    %v666 = vshrl.u32 920167782, %v654
    %v667 = vor.u32 %v665, %v666
    %v668 = vshll.u32 920167782, %v653
    %v669 = vshrl.u32 1326507024, %v654
    %v670 = vor.u32 %v668, %v669
    %vm671 = vcmp.lt.s32.totalorder %v652, 1
    %vm672 = vcmp.lt.s32.totalorder %v652, 2
    %vm673 = vcmp.lt.s32.totalorder %v652, 3
    %vm674 = vcmp.lt.s32.totalorder %v652, 4
    %v675 = vsel %vm671, %v655, %v658
    %v676 = vsel %vm674, %v664, 2102212464
    %v677 = vsel %vm673, %v661, %v676
    %v678 = vsel %vm672, %v675, %v677
    %v679 = vsel %vm671, %v658, %v661
    %v680 = vsel %vm674, %v667, 920167782
    %v681 = vsel %vm673, %v664, %v680
    %v682 = vsel %vm672, %v679, %v681
    %v683 = vsel %vm671, %v661, %v664
    %v684 = vsel %vm674, %v670, 1326507024
    %v685 = vsel %vm673, %v667, %v684
    %v686 = vsel %vm672, %v683, %v685
    %v687 = vshll.u32 %v647, 8
    %v688 = vmul.u32.u64.compose %v687, %v686
    %v689 = vextract.low.u32 %v688
    %v690 = vextract.high.u32 %v688
    %v691 = vmul.u32.u64.compose %v687, %v682
    %v692 = vextract.low.u32 %v691
    %v693 = vextract.high.u32 %v691
    %v694 = vmul.u32 %v687, %v678
    %v695 = vadd.s32 %v690, %v692
    %vm696 = vc.u32 %v690, %v692
    %v697 = vadd.s32 %v693, 1
    %v698 = vsel %vm696, %v697, %v693
    %v699 = vadd.s32 %v694, %v698
    %v700 = vadd.s32 %v699, 536870912
    %v701 = vshrl.u32 %v700, 30
    %v702 = vshll.u32 %v701, 30
    %v703 = vsub.s32 %v699, %v702
    %vm704 = vcmp.lt.s32.totalorder %v703, 0
    %v705 = vsub.s32 0, %v703
    %v706 = vsel %vm704, %v705, %v703
    %v707 = vclz %v706
    %v708 = vsub.s32 %v707, 2
    %vm709 = vcmp.gt.s32.totalorder 0, %v708
    %v710 = vsel %vm709, 0, %v708
    %v711 = vsub.s32 32, %v710
    %v712 = vshll.u32 %v703, %v710
    %v713 = vshrl.u32 %v695, %v711
    %v714 = vor.u32 %v712, %v713
    %v715 = vsub.s32 4294967266, %v710
    %v716 = vadd.s32 %v715, 127
    %v717 = vshll.u32 %v716, 23
    %v718 = vor.u32 4788187, %v717
    %v719 = vand.u32 2147483647, %v718
    %v721 = vcvt.s32.f32 %v714
    %v722 = vmul.f32 %v721, %v719
    %v723 = vxor.u32 %v722, 2147483648
    %v724 = vsel %vm641, %v723, %v722
    %v725 = vsub.s32 4, %v701
    %v726 = vsel %vm641, %v725, %v701
    %v727 = vsel %vm640, %v214, %v724
    %v728 = vsel %vm640, 0, %v726
    %v729 = vcosq.f32.pop %v727
    %v730 = vsinq.f32.pop %v727
    %vm731 = vweird.f32 %v214
    %v732 = vadd.s32 %v728, 3
    %v733 = vand.u32 %v732, 3
    %vm734 = vcmp.lt.s32.totalorder %v733, 2
    %vm735 = vcmp.eq.s32.totalorder %v733, 0
    %v736 = vxor.u32 %v730, 2147483648
    %v737 = vsel %vm735, %v729, %v736
    %vm738 = vcmp.eq.s32.totalorder %v733, 2
    %v739 = vxor.u32 %v729, 2147483648
    %v740 = vsel %vm738, %v739, %v730
    %v741 = vsel %vm734, %v737, %v740
    %v742 = vsel %vm731, nan, %v741
    %v743 = vand.u32 2147483647, %v219
    %vm744 = vcmp.le.f32.partialorder %v743, 0.7853982
    %vm745 = vcmp.lt.s32.totalorder %v219, 0
    %v746 = vand.u32 %v219, 2139095040
    %v747 = vshrl.u32 %v746, 23
    %v748 = vsub.s32 %v747, 127
    %v749 = vand.u32 2147483647, %v219
    %v750 = vand.u32 %v749, 8388607
    %v751 = vor.u32 %v750, 8388608
    %v752 = vsub.s32 0, %v751
    %v753 = vadd.s32 %v748, 1
    %vm754 = vcmp.gt.s32.totalorder %v753, 0
    %v755 = vsel %vm754, %v753, 0
    %v756 = vshrl.u32 %v755, 5
    %v757 = vand.u32 %v755, 31
    %v758 = vsub.s32 32, %v757
    %v759 = vshrl.u32 683565275, %v758
    %v760 = vshll.u32 683565275, %v757
    %v761 = vshrl.u32 2475754826, %v758
    %v762 = vor.u32 %v760, %v761
    %v763 = vshll.u32 2475754826, %v757
    %v764 = vshrl.u32 2131351028, %v758
    %v765 = vor.u32 %v763, %v764
    %v766 = vshll.u32 2131351028, %v757
    %v767 = vshrl.u32 2102212464, %v758
    %v768 = vor.u32 %v766, %v767
    %v769 = vshll.u32 2102212464, %v757
    %v770 = vshrl.u32 920167782, %v758
    %v771 = vor.u32 %v769, %v770
    %v772 = vshll.u32 920167782, %v757
    %v773 = vshrl.u32 1326507024, %v758
    %v774 = vor.u32 %v772, %v773
    %vm775 = vcmp.lt.s32.totalorder %v756, 1
    %vm776 = vcmp.lt.s32.totalorder %v756, 2
    %vm777 = vcmp.lt.s32.totalorder %v756, 3
    %vm778 = vcmp.lt.s32.totalorder %v756, 4
    %v779 = vsel %vm775, %v759, %v762
    %v780 = vsel %vm778, %v768, 2102212464
    %v781 = vsel %vm777, %v765, %v780
    %v782 = vsel %vm776, %v779, %v781
    %v783 = vsel %vm775, %v762, %v765
    %v784 = vsel %vm778, %v771, 920167782
    %v785 = vsel %vm777, %v768, %v784
    %v786 = vsel %vm776, %v783, %v785
    %v787 = vsel %vm775, %v765, %v768
    %v788 = vsel %vm778, %v774, 1326507024
    %v789 = vsel %vm777, %v771, %v788
    %v790 = vsel %vm776, %v787, %v789
    %v791 = vshll.u32 %v751, 8
    %v792 = vmul.u32.u64.compose %v791, %v790
    %v793 = vextract.low.u32 %v792
    %v794 = vextract.high.u32 %v792
    %v795 = vmul.u32.u64.compose %v791, %v786
    %v796 = vextract.low.u32 %v795
    %v797 = vextract.high.u32 %v795
    %v798 = vmul.u32 %v791, %v782
    %v799 = vadd.s32 %v794, %v796
    %vm800 = vc.u32 %v794, %v796
    %v801 = vadd.s32 %v797, 1
    %v802 = vsel %vm800, %v801, %v797
    %v803 = vadd.s32 %v798, %v802
    %v804 = vadd.s32 %v803, 536870912
    %v805 = vshrl.u32 %v804, 30
    %v806 = vshll.u32 %v805, 30
    %v807 = vsub.s32 %v803, %v806
    %vm808 = vcmp.lt.s32.totalorder %v807, 0
    %v809 = vsub.s32 0, %v807
    %v810 = vsel %vm808, %v809, %v807
    %v811 = vclz %v810
    %v812 = vsub.s32 %v811, 2
    %vm813 = vcmp.gt.s32.totalorder 0, %v812
    %v814 = vsel %vm813, 0, %v812
    %v815 = vsub.s32 32, %v814
    %v816 = vshll.u32 %v807, %v814
    %v817 = vshrl.u32 %v799, %v815
    %v818 = vor.u32 %v816, %v817
    %v819 = vsub.s32 4294967266, %v814
    %v820 = vadd.s32 %v819, 127
    %v821 = vshll.u32 %v820, 23
    %v822 = vor.u32 4788187, %v821
    %v823 = vand.u32 2147483647, %v822
    %v825 = vcvt.s32.f32 %v818
    %v826 = vmul.f32 %v825, %v823
    %v827 = vxor.u32 %v826, 2147483648
    %v828 = vsel %vm745, %v827, %v826
    %v829 = vsub.s32 4, %v805
    %v830 = vsel %vm745, %v829, %v805
    %v831 = vsel %vm744, %v219, %v828
    %v832 = vsel %vm744, 0, %v830
    %v833 = vcosq.f32.pop %v831
    %v834 = vsinq.f32.pop %v831
    %vm835 = vweird.f32 %v219
    %v836 = vadd.s32 %v832, 3
    %v837 = vand.u32 %v836, 3
    %vm838 = vcmp.lt.s32.totalorder %v837, 2
    %vm839 = vcmp.eq.s32.totalorder %v837, 0
    %v840 = vxor.u32 %v834, 2147483648
    %v841 = vsel %vm839, %v833, %v840
    %vm842 = vcmp.eq.s32.totalorder %v837, 2
    %v843 = vxor.u32 %v833, 2147483648
    %v844 = vsel %vm842, %v843, %v834
    %v845 = vsel %vm838, %v841, %v844
    %v846 = vsel %vm835, nan, %v845
    %v847 = vand.u32 2147483647, %v224
    %vm848 = vcmp.le.f32.partialorder %v847, 0.7853982
    %vm849 = vcmp.lt.s32.totalorder %v224, 0
    %v850 = vand.u32 %v224, 2139095040
    %v851 = vshrl.u32 %v850, 23
    %v852 = vsub.s32 %v851, 127
    %v853 = vand.u32 2147483647, %v224
    %v854 = vand.u32 %v853, 8388607
    %v855 = vor.u32 %v854, 8388608
    %v856 = vsub.s32 0, %v855
    %v857 = vadd.s32 %v852, 1
    %vm858 = vcmp.gt.s32.totalorder %v857, 0
    %v859 = vsel %vm858, %v857, 0
    %v860 = vshrl.u32 %v859, 5
    %v861 = vand.u32 %v859, 31
    %v862 = vsub.s32 32, %v861
    %v863 = vshrl.u32 683565275, %v862
    %v864 = vshll.u32 683565275, %v861
    %v865 = vshrl.u32 2475754826, %v862
    %v866 = vor.u32 %v864, %v865
    %v867 = vshll.u32 2475754826, %v861
    %v868 = vshrl.u32 2131351028, %v862
    %v869 = vor.u32 %v867, %v868
    %v870 = vshll.u32 2131351028, %v861
    %v871 = vshrl.u32 2102212464, %v862
    %v872 = vor.u32 %v870, %v871
    %v873 = vshll.u32 2102212464, %v861
    %v874 = vshrl.u32 920167782, %v862
    %v875 = vor.u32 %v873, %v874
    %v876 = vshll.u32 920167782, %v861
    %v877 = vshrl.u32 1326507024, %v862
    %v878 = vor.u32 %v876, %v877
    %vm879 = vcmp.lt.s32.totalorder %v860, 1
    %vm880 = vcmp.lt.s32.totalorder %v860, 2
    %vm881 = vcmp.lt.s32.totalorder %v860, 3
    %vm882 = vcmp.lt.s32.totalorder %v860, 4
    %v883 = vsel %vm879, %v863, %v866
    %v884 = vsel %vm882, %v872, 2102212464
    %v885 = vsel %vm881, %v869, %v884
    %v886 = vsel %vm880, %v883, %v885
    %v887 = vsel %vm879, %v866, %v869
    %v888 = vsel %vm882, %v875, 920167782
    %v889 = vsel %vm881, %v872, %v888
    %v890 = vsel %vm880, %v887, %v889
    %v891 = vsel %vm879, %v869, %v872
    %v892 = vsel %vm882, %v878, 1326507024
    %v893 = vsel %vm881, %v875, %v892
    %v894 = vsel %vm880, %v891, %v893
    %v895 = vshll.u32 %v855, 8
    %v896 = vmul.u32.u64.compose %v895, %v894
    %v897 = vextract.low.u32 %v896
    %v898 = vextract.high.u32 %v896
    %v899 = vmul.u32.u64.compose %v895, %v890
    %v900 = vextract.low.u32 %v899
    %v901 = vextract.high.u32 %v899
    %v902 = vmul.u32 %v895, %v886
    %v903 = vadd.s32 %v898, %v900
    %vm904 = vc.u32 %v898, %v900
    %v905 = vadd.s32 %v901, 1
    %v906 = vsel %vm904, %v905, %v901
    %v907 = vadd.s32 %v902, %v906
    %v908 = vadd.s32 %v907, 536870912
    %v909 = vshrl.u32 %v908, 30
    %v910 = vshll.u32 %v909, 30
    %v911 = vsub.s32 %v907, %v910
    %vm912 = vcmp.lt.s32.totalorder %v911, 0
    %v913 = vsub.s32 0, %v911
    %v914 = vsel %vm912, %v913, %v911
    %v915 = vclz %v914
    %v916 = vsub.s32 %v915, 2
    %vm917 = vcmp.gt.s32.totalorder 0, %v916
    %v918 = vsel %vm917, 0, %v916
    %v919 = vsub.s32 32, %v918
    %v920 = vshll.u32 %v911, %v918
    %v921 = vshrl.u32 %v903, %v919
    %v922 = vor.u32 %v920, %v921
    %v923 = vsub.s32 4294967266, %v918
    %v924 = vadd.s32 %v923, 127
    %v925 = vshll.u32 %v924, 23
    %v926 = vor.u32 4788187, %v925
    %v927 = vand.u32 2147483647, %v926
    %v929 = vcvt.s32.f32 %v922
    %v930 = vmul.f32 %v929, %v927
    %v931 = vxor.u32 %v930, 2147483648
    %v932 = vsel %vm849, %v931, %v930
    %v933 = vsub.s32 4, %v909
    %v934 = vsel %vm849, %v933, %v909
    %v935 = vsel %vm848, %v224, %v932
    %v936 = vsel %vm848, 0, %v934
    %v937 = vcosq.f32.pop %v935
    %v938 = vsinq.f32.pop %v935
    %vm939 = vweird.f32 %v224
    %v940 = vadd.s32 %v936, 3
    %v941 = vand.u32 %v940, 3
    %vm942 = vcmp.lt.s32.totalorder %v941, 2
    %vm943 = vcmp.eq.s32.totalorder %v941, 0
    %v944 = vxor.u32 %v938, 2147483648
    %v945 = vsel %vm943, %v937, %v944
    %vm946 = vcmp.eq.s32.totalorder %v941, 2
    %v947 = vxor.u32 %v937, 2147483648
    %v948 = vsel %vm946, %v947, %v938
    %v949 = vsel %vm942, %v945, %v948
    %v950 = vsel %vm939, nan, %v949
    %v951 = vand.u32 2147483647, %v229
    %vm952 = vcmp.le.f32.partialorder %v951, 0.7853982
    %vm953 = vcmp.lt.s32.totalorder %v229, 0
    %v954 = vand.u32 %v229, 2139095040
    %v955 = vshrl.u32 %v954, 23
    %v956 = vsub.s32 %v955, 127
    %v957 = vand.u32 2147483647, %v229
    %v958 = vand.u32 %v957, 8388607
    %v959 = vor.u32 %v958, 8388608
    %v960 = vsub.s32 0, %v959
    %v961 = vadd.s32 %v956, 1
    %vm962 = vcmp.gt.s32.totalorder %v961, 0
    %v963 = vsel %vm962, %v961, 0
    %v964 = vshrl.u32 %v963, 5
    %v965 = vand.u32 %v963, 31
    %v966 = vsub.s32 32, %v965
    %v967 = vshrl.u32 683565275, %v966
    %v968 = vshll.u32 683565275, %v965
    %v969 = vshrl.u32 2475754826, %v966
    %v970 = vor.u32 %v968, %v969
    %v971 = vshll.u32 2475754826, %v965
    %v972 = vshrl.u32 2131351028, %v966
    %v973 = vor.u32 %v971, %v972
    %v974 = vshll.u32 2131351028, %v965
    %v975 = vshrl.u32 2102212464, %v966
    %v976 = vor.u32 %v974, %v975
    %v977 = vshll.u32 2102212464, %v965
    %v978 = vshrl.u32 920167782, %v966
    %v979 = vor.u32 %v977, %v978
    %v980 = vshll.u32 920167782, %v965
    %v981 = vshrl.u32 1326507024, %v966
    %v982 = vor.u32 %v980, %v981
    %vm983 = vcmp.lt.s32.totalorder %v964, 1
    %vm984 = vcmp.lt.s32.totalorder %v964, 2
    %vm985 = vcmp.lt.s32.totalorder %v964, 3
    %vm986 = vcmp.lt.s32.totalorder %v964, 4
    %v987 = vsel %vm983, %v967, %v970
    %v988 = vsel %vm986, %v976, 2102212464
    %v989 = vsel %vm985, %v973, %v988
    %v990 = vsel %vm984, %v987, %v989
    %v991 = vsel %vm983, %v970, %v973
    %v992 = vsel %vm986, %v979, 920167782
    %v993 = vsel %vm985, %v976, %v992
    %v994 = vsel %vm984, %v991, %v993
    %v995 = vsel %vm983, %v973, %v976
    %v996 = vsel %vm986, %v982, 1326507024
    %v997 = vsel %vm985, %v979, %v996
    %v998 = vsel %vm984, %v995, %v997
    %v999 = vshll.u32 %v959, 8
    %v1000 = vmul.u32.u64.compose %v999, %v998
    %v1001 = vextract.low.u32 %v1000
    %v1002 = vextract.high.u32 %v1000
    %v1003 = vmul.u32.u64.compose %v999, %v994
    %v1004 = vextract.low.u32 %v1003
    %v1005 = vextract.high.u32 %v1003
    %v1006 = vmul.u32 %v999, %v990
    %v1007 = vadd.s32 %v1002, %v1004
    %vm1008 = vc.u32 %v1002, %v1004
    %v1009 = vadd.s32 %v1005, 1
    %v1010 = vsel %vm1008, %v1009, %v1005
    %v1011 = vadd.s32 %v1006, %v1010
    %v1012 = vadd.s32 %v1011, 536870912
    %v1013 = vshrl.u32 %v1012, 30
    %v1014 = vshll.u32 %v1013, 30
    %v1015 = vsub.s32 %v1011, %v1014
    %vm1016 = vcmp.lt.s32.totalorder %v1015, 0
    %v1017 = vsub.s32 0, %v1015
    %v1018 = vsel %vm1016, %v1017, %v1015
    %v1019 = vclz %v1018
    %v1020 = vsub.s32 %v1019, 2
    %vm1021 = vcmp.gt.s32.totalorder 0, %v1020
    %v1022 = vsel %vm1021, 0, %v1020
    %v1023 = vsub.s32 32, %v1022
    %v1024 = vshll.u32 %v1015, %v1022
    %v1025 = vshrl.u32 %v1007, %v1023
    %v1026 = vor.u32 %v1024, %v1025
    %v1027 = vsub.s32 4294967266, %v1022
    %v1028 = vadd.s32 %v1027, 127
    %v1029 = vshll.u32 %v1028, 23
    %v1030 = vor.u32 4788187, %v1029
    %v1031 = vand.u32 2147483647, %v1030
    %v1033 = vcvt.s32.f32 %v1026
    %v1034 = vmul.f32 %v1033, %v1031
    %v1035 = vxor.u32 %v1034, 2147483648
    %v1036 = vsel %vm953, %v1035, %v1034
    %v1037 = vsub.s32 4, %v1013
    %v1038 = vsel %vm953, %v1037, %v1013
    %v1039 = vsel %vm952, %v229, %v1036
    %v1040 = vsel %vm952, 0, %v1038
    %v1041 = vcosq.f32.pop %v1039
    %v1042 = vsinq.f32.pop %v1039
    %vm1043 = vweird.f32 %v229
    %v1044 = vadd.s32 %v1040, 3
    %v1045 = vand.u32 %v1044, 3
    %vm1046 = vcmp.lt.s32.totalorder %v1045, 2
    %vm1047 = vcmp.eq.s32.totalorder %v1045, 0
    %v1048 = vxor.u32 %v1042, 2147483648
    %v1049 = vsel %vm1047, %v1041, %v1048
    %vm1050 = vcmp.eq.s32.totalorder %v1045, 2
    %v1051 = vxor.u32 %v1041, 2147483648
    %v1052 = vsel %vm1050, %v1051, %v1042
    %v1053 = vsel %vm1046, %v1049, %v1052
    %v1054 = vsel %vm1043, nan, %v1053
    %v1055 = vand.u32 2147483647, %v234
    %vm1056 = vcmp.le.f32.partialorder %v1055, 0.7853982
    %vm1057 = vcmp.lt.s32.totalorder %v234, 0
    %v1058 = vand.u32 %v234, 2139095040
    %v1059 = vshrl.u32 %v1058, 23
    %v1060 = vsub.s32 %v1059, 127
    %v1061 = vand.u32 2147483647, %v234
    %v1062 = vand.u32 %v1061, 8388607
    %v1063 = vor.u32 %v1062, 8388608
    %v1064 = vsub.s32 0, %v1063
    %v1065 = vadd.s32 %v1060, 1
    %vm1066 = vcmp.gt.s32.totalorder %v1065, 0
    %v1067 = vsel %vm1066, %v1065, 0
    %v1068 = vshrl.u32 %v1067, 5
    %v1069 = vand.u32 %v1067, 31
    %v1070 = vsub.s32 32, %v1069
    %v1071 = vshrl.u32 683565275, %v1070
    %v1072 = vshll.u32 683565275, %v1069
    %v1073 = vshrl.u32 2475754826, %v1070
    %v1074 = vor.u32 %v1072, %v1073
    %v1075 = vshll.u32 2475754826, %v1069
    %v1076 = vshrl.u32 2131351028, %v1070
    %v1077 = vor.u32 %v1075, %v1076
    %v1078 = vshll.u32 2131351028, %v1069
    %v1079 = vshrl.u32 2102212464, %v1070
    %v1080 = vor.u32 %v1078, %v1079
    %v1081 = vshll.u32 2102212464, %v1069
    %v1082 = vshrl.u32 920167782, %v1070
    %v1083 = vor.u32 %v1081, %v1082
    %v1084 = vshll.u32 920167782, %v1069
    %v1085 = vshrl.u32 1326507024, %v1070
    %v1086 = vor.u32 %v1084, %v1085
    %vm1087 = vcmp.lt.s32.totalorder %v1068, 1
    %vm1088 = vcmp.lt.s32.totalorder %v1068, 2
    %vm1089 = vcmp.lt.s32.totalorder %v1068, 3
    %vm1090 = vcmp.lt.s32.totalorder %v1068, 4
    %v1091 = vsel %vm1087, %v1071, %v1074
    %v1092 = vsel %vm1090, %v1080, 2102212464
    %v1093 = vsel %vm1089, %v1077, %v1092
    %v1094 = vsel %vm1088, %v1091, %v1093
    %v1095 = vsel %vm1087, %v1074, %v1077
    %v1096 = vsel %vm1090, %v1083, 920167782
    %v1097 = vsel %vm1089, %v1080, %v1096
    %v1098 = vsel %vm1088, %v1095, %v1097
    %v1099 = vsel %vm1087, %v1077, %v1080
    %v1100 = vsel %vm1090, %v1086, 1326507024
    %v1101 = vsel %vm1089, %v1083, %v1100
    %v1102 = vsel %vm1088, %v1099, %v1101
    %v1103 = vshll.u32 %v1063, 8
    %v1104 = vmul.u32.u64.compose %v1103, %v1102
    %v1105 = vextract.low.u32 %v1104
    %v1106 = vextract.high.u32 %v1104
    %v1107 = vmul.u32.u64.compose %v1103, %v1098
    %v1108 = vextract.low.u32 %v1107
    %v1109 = vextract.high.u32 %v1107
    %v1110 = vmul.u32 %v1103, %v1094
    %v1111 = vadd.s32 %v1106, %v1108
    %vm1112 = vc.u32 %v1106, %v1108
    %v1113 = vadd.s32 %v1109, 1
    %v1114 = vsel %vm1112, %v1113, %v1109
    %v1115 = vadd.s32 %v1110, %v1114
    %v1116 = vadd.s32 %v1115, 536870912
    %v1117 = vshrl.u32 %v1116, 30
    %v1118 = vshll.u32 %v1117, 30
    %v1119 = vsub.s32 %v1115, %v1118
    %vm1120 = vcmp.lt.s32.totalorder %v1119, 0
    %v1121 = vsub.s32 0, %v1119
    %v1122 = vsel %vm1120, %v1121, %v1119
    %v1123 = vclz %v1122
    %v1124 = vsub.s32 %v1123, 2
    %vm1125 = vcmp.gt.s32.totalorder 0, %v1124
    %v1126 = vsel %vm1125, 0, %v1124
    %v1127 = vsub.s32 32, %v1126
    %v1128 = vshll.u32 %v1119, %v1126
    %v1129 = vshrl.u32 %v1111, %v1127
    %v1130 = vor.u32 %v1128, %v1129
    %v1131 = vsub.s32 4294967266, %v1126
    %v1132 = vadd.s32 %v1131, 127
    %v1133 = vshll.u32 %v1132, 23
    %v1134 = vor.u32 4788187, %v1133
    %v1135 = vand.u32 2147483647, %v1134
    %v1137 = vcvt.s32.f32 %v1130
    %v1138 = vmul.f32 %v1137, %v1135
    %v1139 = vxor.u32 %v1138, 2147483648
    %v1140 = vsel %vm1057, %v1139, %v1138
    %v1141 = vsub.s32 4, %v1117
    %v1142 = vsel %vm1057, %v1141, %v1117
    %v1143 = vsel %vm1056, %v234, %v1140
    %v1144 = vsel %vm1056, 0, %v1142
    %v1145 = vcosq.f32.pop %v1143
    %v1146 = vsinq.f32.pop %v1143
    %vm1147 = vweird.f32 %v234
    %v1148 = vadd.s32 %v1144, 3
    %v1149 = vand.u32 %v1148, 3
    %vm1150 = vcmp.lt.s32.totalorder %v1149, 2
    %vm1151 = vcmp.eq.s32.totalorder %v1149, 0
    %v1152 = vxor.u32 %v1146, 2147483648
    %v1153 = vsel %vm1151, %v1145, %v1152
    %vm1154 = vcmp.eq.s32.totalorder %v1149, 2
    %v1155 = vxor.u32 %v1145, 2147483648
    %v1156 = vsel %vm1154, %v1155, %v1146
    %v1157 = vsel %vm1150, %v1153, %v1156
    %v1158 = vsel %vm1147, nan, %v1157
    %v1159 = vand.u32 2147483647, %v239
    %vm1160 = vcmp.le.f32.partialorder %v1159, 0.7853982
    %vm1161 = vcmp.lt.s32.totalorder %v239, 0
    %v1162 = vand.u32 %v239, 2139095040
    %v1163 = vshrl.u32 %v1162, 23
    %v1164 = vsub.s32 %v1163, 127
    %v1165 = vand.u32 2147483647, %v239
    %v1166 = vand.u32 %v1165, 8388607
    %v1167 = vor.u32 %v1166, 8388608
    %v1168 = vsub.s32 0, %v1167
    %v1169 = vadd.s32 %v1164, 1
    %vm1170 = vcmp.gt.s32.totalorder %v1169, 0
    %v1171 = vsel %vm1170, %v1169, 0
    %v1172 = vshrl.u32 %v1171, 5
    %v1173 = vand.u32 %v1171, 31
    %v1174 = vsub.s32 32, %v1173
    %v1175 = vshrl.u32 683565275, %v1174
    %v1176 = vshll.u32 683565275, %v1173
    %v1177 = vshrl.u32 2475754826, %v1174
    %v1178 = vor.u32 %v1176, %v1177
    %v1179 = vshll.u32 2475754826, %v1173
    %v1180 = vshrl.u32 2131351028, %v1174
    %v1181 = vor.u32 %v1179, %v1180
    %v1182 = vshll.u32 2131351028, %v1173
    %v1183 = vshrl.u32 2102212464, %v1174
    %v1184 = vor.u32 %v1182, %v1183
    %v1185 = vshll.u32 2102212464, %v1173
    %v1186 = vshrl.u32 920167782, %v1174
    %v1187 = vor.u32 %v1185, %v1186
    %v1188 = vshll.u32 920167782, %v1173
    %v1189 = vshrl.u32 1326507024, %v1174
    %v1190 = vor.u32 %v1188, %v1189
    %vm1191 = vcmp.lt.s32.totalorder %v1172, 1
    %vm1192 = vcmp.lt.s32.totalorder %v1172, 2
    %vm1193 = vcmp.lt.s32.totalorder %v1172, 3
    %vm1194 = vcmp.lt.s32.totalorder %v1172, 4
    %v1195 = vsel %vm1191, %v1175, %v1178
    %v1196 = vsel %vm1194, %v1184, 2102212464
    %v1197 = vsel %vm1193, %v1181, %v1196
    %v1198 = vsel %vm1192, %v1195, %v1197
    %v1199 = vsel %vm1191, %v1178, %v1181
    %v1200 = vsel %vm1194, %v1187, 920167782
    %v1201 = vsel %vm1193, %v1184, %v1200
    %v1202 = vsel %vm1192, %v1199, %v1201
    %v1203 = vsel %vm1191, %v1181, %v1184
    %v1204 = vsel %vm1194, %v1190, 1326507024
    %v1205 = vsel %vm1193, %v1187, %v1204
    %v1206 = vsel %vm1192, %v1203, %v1205
    %v1207 = vshll.u32 %v1167, 8
    %v1208 = vmul.u32.u64.compose %v1207, %v1206
    %v1209 = vextract.low.u32 %v1208
    %v1210 = vextract.high.u32 %v1208
    %v1211 = vmul.u32.u64.compose %v1207, %v1202
    %v1212 = vextract.low.u32 %v1211
    %v1213 = vextract.high.u32 %v1211
    %v1214 = vmul.u32 %v1207, %v1198
    %v1215 = vadd.s32 %v1210, %v1212
    %vm1216 = vc.u32 %v1210, %v1212
    %v1217 = vadd.s32 %v1213, 1
    %v1218 = vsel %vm1216, %v1217, %v1213
    %v1219 = vadd.s32 %v1214, %v1218
    %v1220 = vadd.s32 %v1219, 536870912
    %v1221 = vshrl.u32 %v1220, 30
    %v1222 = vshll.u32 %v1221, 30
    %v1223 = vsub.s32 %v1219, %v1222
    %vm1224 = vcmp.lt.s32.totalorder %v1223, 0
    %v1225 = vsub.s32 0, %v1223
    %v1226 = vsel %vm1224, %v1225, %v1223
    %v1227 = vclz %v1226
    %v1228 = vsub.s32 %v1227, 2
    %vm1229 = vcmp.gt.s32.totalorder 0, %v1228
    %v1230 = vsel %vm1229, 0, %v1228
    %v1231 = vsub.s32 32, %v1230
    %v1232 = vshll.u32 %v1223, %v1230
    %v1233 = vshrl.u32 %v1215, %v1231
    %v1234 = vor.u32 %v1232, %v1233
    %v1235 = vsub.s32 4294967266, %v1230
    %v1236 = vadd.s32 %v1235, 127
    %v1237 = vshll.u32 %v1236, 23
    %v1238 = vor.u32 4788187, %v1237
    %v1239 = vand.u32 2147483647, %v1238
    %v1241 = vcvt.s32.f32 %v1234
    %v1242 = vmul.f32 %v1241, %v1239
    %v1243 = vxor.u32 %v1242, 2147483648
    %v1244 = vsel %vm1161, %v1243, %v1242
    %v1245 = vsub.s32 4, %v1221
    %v1246 = vsel %vm1161, %v1245, %v1221
    %v1247 = vsel %vm1160, %v239, %v1244
    %v1248 = vsel %vm1160, 0, %v1246
    %v1249 = vcosq.f32.pop %v1247
    %v1250 = vsinq.f32.pop %v1247
    %vm1251 = vweird.f32 %v239
    %v1252 = vadd.s32 %v1248, 3
    %v1253 = vand.u32 %v1252, 3
    %vm1254 = vcmp.lt.s32.totalorder %v1253, 2
    %vm1255 = vcmp.eq.s32.totalorder %v1253, 0
    %v1256 = vxor.u32 %v1250, 2147483648
    %v1257 = vsel %vm1255, %v1249, %v1256
    %vm1258 = vcmp.eq.s32.totalorder %v1253, 2
    %v1259 = vxor.u32 %v1249, 2147483648
    %v1260 = vsel %vm1258, %v1259, %v1250
    %v1261 = vsel %vm1254, %v1257, %v1260
    %v1262 = vsel %vm1251, nan, %v1261
    %v1263 = vand.u32 2147483647, %v244
    %vm1264 = vcmp.le.f32.partialorder %v1263, 0.7853982
    %vm1265 = vcmp.lt.s32.totalorder %v244, 0
    %v1266 = vand.u32 %v244, 2139095040
    %v1267 = vshrl.u32 %v1266, 23
    %v1268 = vsub.s32 %v1267, 127
    %v1269 = vand.u32 2147483647, %v244
    %v1270 = vand.u32 %v1269, 8388607
    %v1271 = vor.u32 %v1270, 8388608
    %v1272 = vsub.s32 0, %v1271
    %v1273 = vadd.s32 %v1268, 1
    %vm1274 = vcmp.gt.s32.totalorder %v1273, 0
    %v1275 = vsel %vm1274, %v1273, 0
    %v1276 = vshrl.u32 %v1275, 5
    %v1277 = vand.u32 %v1275, 31
    %v1278 = vsub.s32 32, %v1277
    %v1279 = vshrl.u32 683565275, %v1278
    %v1280 = vshll.u32 683565275, %v1277
    %v1281 = vshrl.u32 2475754826, %v1278
    %v1282 = vor.u32 %v1280, %v1281
    %v1283 = vshll.u32 2475754826, %v1277
    %v1284 = vshrl.u32 2131351028, %v1278
    %v1285 = vor.u32 %v1283, %v1284
    %v1286 = vshll.u32 2131351028, %v1277
    %v1287 = vshrl.u32 2102212464, %v1278
    %v1288 = vor.u32 %v1286, %v1287
    %v1289 = vshll.u32 2102212464, %v1277
    %v1290 = vshrl.u32 920167782, %v1278
    %v1291 = vor.u32 %v1289, %v1290
    %v1292 = vshll.u32 920167782, %v1277
    %v1293 = vshrl.u32 1326507024, %v1278
    %v1294 = vor.u32 %v1292, %v1293
    %vm1295 = vcmp.lt.s32.totalorder %v1276, 1
    %vm1296 = vcmp.lt.s32.totalorder %v1276, 2
    %vm1297 = vcmp.lt.s32.totalorder %v1276, 3
    %vm1298 = vcmp.lt.s32.totalorder %v1276, 4
    %v1299 = vsel %vm1295, %v1279, %v1282
    %v1300 = vsel %vm1298, %v1288, 2102212464
    %v1301 = vsel %vm1297, %v1285, %v1300
    %v1302 = vsel %vm1296, %v1299, %v1301
    %v1303 = vsel %vm1295, %v1282, %v1285
    %v1304 = vsel %vm1298, %v1291, 920167782
    %v1305 = vsel %vm1297, %v1288, %v1304
    %v1306 = vsel %vm1296, %v1303, %v1305
    %v1307 = vsel %vm1295, %v1285, %v1288
    %v1308 = vsel %vm1298, %v1294, 1326507024
    %v1309 = vsel %vm1297, %v1291, %v1308
    %v1310 = vsel %vm1296, %v1307, %v1309
    %v1311 = vshll.u32 %v1271, 8
    %v1312 = vmul.u32.u64.compose %v1311, %v1310
    %v1313 = vextract.low.u32 %v1312
    %v1314 = vextract.high.u32 %v1312
    %v1315 = vmul.u32.u64.compose %v1311, %v1306
    %v1316 = vextract.low.u32 %v1315
    %v1317 = vextract.high.u32 %v1315
    %v1318 = vmul.u32 %v1311, %v1302
    %v1319 = vadd.s32 %v1314, %v1316
    %vm1320 = vc.u32 %v1314, %v1316
    %v1321 = vadd.s32 %v1317, 1
    %v1322 = vsel %vm1320, %v1321, %v1317
    %v1323 = vadd.s32 %v1318, %v1322
    %v1324 = vadd.s32 %v1323, 536870912
    %v1325 = vshrl.u32 %v1324, 30
    %v1326 = vshll.u32 %v1325, 30
    %v1327 = vsub.s32 %v1323, %v1326
    %vm1328 = vcmp.lt.s32.totalorder %v1327, 0
    %v1329 = vsub.s32 0, %v1327
    %v1330 = vsel %vm1328, %v1329, %v1327
    %v1331 = vclz %v1330
    %v1332 = vsub.s32 %v1331, 2
    %vm1333 = vcmp.gt.s32.totalorder 0, %v1332
    %v1334 = vsel %vm1333, 0, %v1332
    %v1335 = vsub.s32 32, %v1334
    %v1336 = vshll.u32 %v1327, %v1334
    %v1337 = vshrl.u32 %v1319, %v1335
    %v1338 = vor.u32 %v1336, %v1337
    %v1339 = vsub.s32 4294967266, %v1334
    %v1340 = vadd.s32 %v1339, 127
    %v1341 = vshll.u32 %v1340, 23
    %v1342 = vor.u32 4788187, %v1341
    %v1343 = vand.u32 2147483647, %v1342
    %v1345 = vcvt.s32.f32 %v1338
    %v1346 = vmul.f32 %v1345, %v1343
    %v1347 = vxor.u32 %v1346, 2147483648
    %v1348 = vsel %vm1265, %v1347, %v1346
    %v1349 = vsub.s32 4, %v1325
    %v1350 = vsel %vm1265, %v1349, %v1325
    %v1351 = vsel %vm1264, %v244, %v1348
    %v1352 = vsel %vm1264, 0, %v1350
    %v1353 = vcosq.f32.pop %v1351
    %v1354 = vsinq.f32.pop %v1351
    %vm1355 = vweird.f32 %v244
    %v1356 = vadd.s32 %v1352, 3
    %v1357 = vand.u32 %v1356, 3
    %vm1358 = vcmp.lt.s32.totalorder %v1357, 2
    %vm1359 = vcmp.eq.s32.totalorder %v1357, 0
    %v1360 = vxor.u32 %v1354, 2147483648
    %v1361 = vsel %vm1359, %v1353, %v1360
    %vm1362 = vcmp.eq.s32.totalorder %v1357, 2
    %v1363 = vxor.u32 %v1353, 2147483648
    %v1364 = vsel %vm1362, %v1363, %v1354
    %v1365 = vsel %vm1358, %v1361, %v1364
    %v1366 = vsel %vm1355, nan, %v1365
    %v1367 = vand.u32 2147483647, %v249
    %vm1368 = vcmp.le.f32.partialorder %v1367, 0.7853982
    %vm1369 = vcmp.lt.s32.totalorder %v249, 0
    %v1370 = vand.u32 %v249, 2139095040
    %v1371 = vshrl.u32 %v1370, 23
    %v1372 = vsub.s32 %v1371, 127
    %v1373 = vand.u32 2147483647, %v249
    %v1374 = vand.u32 %v1373, 8388607
    %v1375 = vor.u32 %v1374, 8388608
    %v1376 = vsub.s32 0, %v1375
    %v1377 = vadd.s32 %v1372, 1
    %vm1378 = vcmp.gt.s32.totalorder %v1377, 0
    %v1379 = vsel %vm1378, %v1377, 0
    %v1380 = vshrl.u32 %v1379, 5
    %v1381 = vand.u32 %v1379, 31
    %v1382 = vsub.s32 32, %v1381
    %v1383 = vshrl.u32 683565275, %v1382
    %v1384 = vshll.u32 683565275, %v1381
    %v1385 = vshrl.u32 2475754826, %v1382
    %v1386 = vor.u32 %v1384, %v1385
    %v1387 = vshll.u32 2475754826, %v1381
    %v1388 = vshrl.u32 2131351028, %v1382
    %v1389 = vor.u32 %v1387, %v1388
    %v1390 = vshll.u32 2131351028, %v1381
    %v1391 = vshrl.u32 2102212464, %v1382
    %v1392 = vor.u32 %v1390, %v1391
    %v1393 = vshll.u32 2102212464, %v1381
    %v1394 = vshrl.u32 920167782, %v1382
    %v1395 = vor.u32 %v1393, %v1394
    %v1396 = vshll.u32 920167782, %v1381
    %v1397 = vshrl.u32 1326507024, %v1382
    %v1398 = vor.u32 %v1396, %v1397
    %vm1399 = vcmp.lt.s32.totalorder %v1380, 1
    %vm1400 = vcmp.lt.s32.totalorder %v1380, 2
    %vm1401 = vcmp.lt.s32.totalorder %v1380, 3
    %vm1402 = vcmp.lt.s32.totalorder %v1380, 4
    %v1403 = vsel %vm1399, %v1383, %v1386
    %v1404 = vsel %vm1402, %v1392, 2102212464
    %v1405 = vsel %vm1401, %v1389, %v1404
    %v1406 = vsel %vm1400, %v1403, %v1405
    %v1407 = vsel %vm1399, %v1386, %v1389
    %v1408 = vsel %vm1402, %v1395, 920167782
    %v1409 = vsel %vm1401, %v1392, %v1408
    %v1410 = vsel %vm1400, %v1407, %v1409
    %v1411 = vsel %vm1399, %v1389, %v1392
    %v1412 = vsel %vm1402, %v1398, 1326507024
    %v1413 = vsel %vm1401, %v1395, %v1412
    %v1414 = vsel %vm1400, %v1411, %v1413
    %v1415 = vshll.u32 %v1375, 8
    %v1416 = vmul.u32.u64.compose %v1415, %v1414
    %v1417 = vextract.low.u32 %v1416
    %v1418 = vextract.high.u32 %v1416
    %v1419 = vmul.u32.u64.compose %v1415, %v1410
    %v1420 = vextract.low.u32 %v1419
    %v1421 = vextract.high.u32 %v1419
    %v1422 = vmul.u32 %v1415, %v1406
    %v1423 = vadd.s32 %v1418, %v1420
    %vm1424 = vc.u32 %v1418, %v1420
    %v1425 = vadd.s32 %v1421, 1
    %v1426 = vsel %vm1424, %v1425, %v1421
    %v1427 = vadd.s32 %v1422, %v1426
    %v1428 = vadd.s32 %v1427, 536870912
    %v1429 = vshrl.u32 %v1428, 30
    %v1430 = vshll.u32 %v1429, 30
    %v1431 = vsub.s32 %v1427, %v1430
    %vm1432 = vcmp.lt.s32.totalorder %v1431, 0
    %v1433 = vsub.s32 0, %v1431
    %v1434 = vsel %vm1432, %v1433, %v1431
    %v1435 = vclz %v1434
    %v1436 = vsub.s32 %v1435, 2
    %vm1437 = vcmp.gt.s32.totalorder 0, %v1436
    %v1438 = vsel %vm1437, 0, %v1436
    %v1439 = vsub.s32 32, %v1438
    %v1440 = vshll.u32 %v1431, %v1438
    %v1441 = vshrl.u32 %v1423, %v1439
    %v1442 = vor.u32 %v1440, %v1441
    %v1443 = vsub.s32 4294967266, %v1438
    %v1444 = vadd.s32 %v1443, 127
    %v1445 = vshll.u32 %v1444, 23
    %v1446 = vor.u32 4788187, %v1445
    %v1447 = vand.u32 2147483647, %v1446
    %v1449 = vcvt.s32.f32 %v1442
    %v1450 = vmul.f32 %v1449, %v1447
    %v1451 = vxor.u32 %v1450, 2147483648
    %v1452 = vsel %vm1369, %v1451, %v1450
    %v1453 = vsub.s32 4, %v1429
    %v1454 = vsel %vm1369, %v1453, %v1429
    %v1455 = vsel %vm1368, %v249, %v1452
    %v1456 = vsel %vm1368, 0, %v1454
    %v1457 = vcosq.f32.pop %v1455
    %v1458 = vsinq.f32.pop %v1455
    %vm1459 = vweird.f32 %v249
    %v1460 = vadd.s32 %v1456, 3
    %v1461 = vand.u32 %v1460, 3
    %vm1462 = vcmp.lt.s32.totalorder %v1461, 2
    %vm1463 = vcmp.eq.s32.totalorder %v1461, 0
    %v1464 = vxor.u32 %v1458, 2147483648
    %v1465 = vsel %vm1463, %v1457, %v1464
    %vm1466 = vcmp.eq.s32.totalorder %v1461, 2
    %v1467 = vxor.u32 %v1457, 2147483648
    %v1468 = vsel %vm1466, %v1467, %v1458
    %v1469 = vsel %vm1462, %v1465, %v1468
    %v1470 = vsel %vm1459, nan, %v1469
    %v1471 = vand.u32 2147483647, %v254
    %vm1472 = vcmp.le.f32.partialorder %v1471, 0.7853982
    %vm1473 = vcmp.lt.s32.totalorder %v254, 0
    %v1474 = vand.u32 %v254, 2139095040
    %v1475 = vshrl.u32 %v1474, 23
    %v1476 = vsub.s32 %v1475, 127
    %v1477 = vand.u32 2147483647, %v254
    %v1478 = vand.u32 %v1477, 8388607
    %v1479 = vor.u32 %v1478, 8388608
    %v1480 = vsub.s32 0, %v1479
    %v1481 = vadd.s32 %v1476, 1
    %vm1482 = vcmp.gt.s32.totalorder %v1481, 0
    %v1483 = vsel %vm1482, %v1481, 0
    %v1484 = vshrl.u32 %v1483, 5
    %v1485 = vand.u32 %v1483, 31
    %v1486 = vsub.s32 32, %v1485
    %v1487 = vshrl.u32 683565275, %v1486
    %v1488 = vshll.u32 683565275, %v1485
    %v1489 = vshrl.u32 2475754826, %v1486
    %v1490 = vor.u32 %v1488, %v1489
    %v1491 = vshll.u32 2475754826, %v1485
    %v1492 = vshrl.u32 2131351028, %v1486
    %v1493 = vor.u32 %v1491, %v1492
    %v1494 = vshll.u32 2131351028, %v1485
    %v1495 = vshrl.u32 2102212464, %v1486
    %v1496 = vor.u32 %v1494, %v1495
    %v1497 = vshll.u32 2102212464, %v1485
    %v1498 = vshrl.u32 920167782, %v1486
    %v1499 = vor.u32 %v1497, %v1498
    %v1500 = vshll.u32 920167782, %v1485
    %v1501 = vshrl.u32 1326507024, %v1486
    %v1502 = vor.u32 %v1500, %v1501
    %vm1503 = vcmp.lt.s32.totalorder %v1484, 1
    %vm1504 = vcmp.lt.s32.totalorder %v1484, 2
    %vm1505 = vcmp.lt.s32.totalorder %v1484, 3
    %vm1506 = vcmp.lt.s32.totalorder %v1484, 4
    %v1507 = vsel %vm1503, %v1487, %v1490
    %v1508 = vsel %vm1506, %v1496, 2102212464
    %v1509 = vsel %vm1505, %v1493, %v1508
    %v1510 = vsel %vm1504, %v1507, %v1509
    %v1511 = vsel %vm1503, %v1490, %v1493
    %v1512 = vsel %vm1506, %v1499, 920167782
    %v1513 = vsel %vm1505, %v1496, %v1512
    %v1514 = vsel %vm1504, %v1511, %v1513
    %v1515 = vsel %vm1503, %v1493, %v1496
    %v1516 = vsel %vm1506, %v1502, 1326507024
    %v1517 = vsel %vm1505, %v1499, %v1516
    %v1518 = vsel %vm1504, %v1515, %v1517
    %v1519 = vshll.u32 %v1479, 8
    %v1520 = vmul.u32.u64.compose %v1519, %v1518
    %v1521 = vextract.low.u32 %v1520
    %v1522 = vextract.high.u32 %v1520
    %v1523 = vmul.u32.u64.compose %v1519, %v1514
    %v1524 = vextract.low.u32 %v1523
    %v1525 = vextract.high.u32 %v1523
    %v1526 = vmul.u32 %v1519, %v1510
    %v1527 = vadd.s32 %v1522, %v1524
    %vm1528 = vc.u32 %v1522, %v1524
    %v1529 = vadd.s32 %v1525, 1
    %v1530 = vsel %vm1528, %v1529, %v1525
    %v1531 = vadd.s32 %v1526, %v1530
    %v1532 = vadd.s32 %v1531, 536870912
    %v1533 = vshrl.u32 %v1532, 30
    %v1534 = vshll.u32 %v1533, 30
    %v1535 = vsub.s32 %v1531, %v1534
    %vm1536 = vcmp.lt.s32.totalorder %v1535, 0
    %v1537 = vsub.s32 0, %v1535
    %v1538 = vsel %vm1536, %v1537, %v1535
    %v1539 = vclz %v1538
    %v1540 = vsub.s32 %v1539, 2
    %vm1541 = vcmp.gt.s32.totalorder 0, %v1540
    %v1542 = vsel %vm1541, 0, %v1540
    %v1543 = vsub.s32 32, %v1542
    %v1544 = vshll.u32 %v1535, %v1542
    %v1545 = vshrl.u32 %v1527, %v1543
    %v1546 = vor.u32 %v1544, %v1545
    %v1547 = vsub.s32 4294967266, %v1542
    %v1548 = vadd.s32 %v1547, 127
    %v1549 = vshll.u32 %v1548, 23
    %v1550 = vor.u32 4788187, %v1549
    %v1551 = vand.u32 2147483647, %v1550
    %v1553 = vcvt.s32.f32 %v1546
    %v1554 = vmul.f32 %v1553, %v1551
    %v1555 = vxor.u32 %v1554, 2147483648
    %v1556 = vsel %vm1473, %v1555, %v1554
    %v1557 = vsub.s32 4, %v1533
    %v1558 = vsel %vm1473, %v1557, %v1533
    %v1559 = vsel %vm1472, %v254, %v1556
    %v1560 = vsel %vm1472, 0, %v1558
    %v1561 = vcosq.f32.pop %v1559
    %v1562 = vsinq.f32.pop %v1559
    %vm1563 = vweird.f32 %v254
    %v1564 = vadd.s32 %v1560, 3
    %v1565 = vand.u32 %v1564, 3
    %vm1566 = vcmp.lt.s32.totalorder %v1565, 2
    %vm1567 = vcmp.eq.s32.totalorder %v1565, 0
    %v1568 = vxor.u32 %v1562, 2147483648
    %v1569 = vsel %vm1567, %v1561, %v1568
    %vm1570 = vcmp.eq.s32.totalorder %v1565, 2
    %v1571 = vxor.u32 %v1561, 2147483648
    %v1572 = vsel %vm1570, %v1571, %v1562
    %v1573 = vsel %vm1566, %v1569, %v1572
    %v1574 = vsel %vm1563, nan, %v1573
    %v1575 = vand.u32 2147483647, %v259
    %vm1576 = vcmp.le.f32.partialorder %v1575, 0.7853982
    %vm1577 = vcmp.lt.s32.totalorder %v259, 0
    %v1578 = vand.u32 %v259, 2139095040
    %v1579 = vshrl.u32 %v1578, 23
    %v1580 = vsub.s32 %v1579, 127
    %v1581 = vand.u32 2147483647, %v259
    %v1582 = vand.u32 %v1581, 8388607
    %v1583 = vor.u32 %v1582, 8388608
    %v1584 = vsub.s32 0, %v1583
    %v1585 = vadd.s32 %v1580, 1
    %vm1586 = vcmp.gt.s32.totalorder %v1585, 0
    %v1587 = vsel %vm1586, %v1585, 0
    %v1588 = vshrl.u32 %v1587, 5
    %v1589 = vand.u32 %v1587, 31
    %v1590 = vsub.s32 32, %v1589
    %v1591 = vshrl.u32 683565275, %v1590
    %v1592 = vshll.u32 683565275, %v1589
    %v1593 = vshrl.u32 2475754826, %v1590
    %v1594 = vor.u32 %v1592, %v1593
    %v1595 = vshll.u32 2475754826, %v1589
    %v1596 = vshrl.u32 2131351028, %v1590
    %v1597 = vor.u32 %v1595, %v1596
    %v1598 = vshll.u32 2131351028, %v1589
    %v1599 = vshrl.u32 2102212464, %v1590
    %v1600 = vor.u32 %v1598, %v1599
    %v1601 = vshll.u32 2102212464, %v1589
    %v1602 = vshrl.u32 920167782, %v1590
    %v1603 = vor.u32 %v1601, %v1602
    %v1604 = vshll.u32 920167782, %v1589
    %v1605 = vshrl.u32 1326507024, %v1590
    %v1606 = vor.u32 %v1604, %v1605
    %vm1607 = vcmp.lt.s32.totalorder %v1588, 1
    %vm1608 = vcmp.lt.s32.totalorder %v1588, 2
    %vm1609 = vcmp.lt.s32.totalorder %v1588, 3
    %vm1610 = vcmp.lt.s32.totalorder %v1588, 4
    %v1611 = vsel %vm1607, %v1591, %v1594
    %v1612 = vsel %vm1610, %v1600, 2102212464
    %v1613 = vsel %vm1609, %v1597, %v1612
    %v1614 = vsel %vm1608, %v1611, %v1613
    %v1615 = vsel %vm1607, %v1594, %v1597
    %v1616 = vsel %vm1610, %v1603, 920167782
    %v1617 = vsel %vm1609, %v1600, %v1616
    %v1618 = vsel %vm1608, %v1615, %v1617
    %v1619 = vsel %vm1607, %v1597, %v1600
    %v1620 = vsel %vm1610, %v1606, 1326507024
    %v1621 = vsel %vm1609, %v1603, %v1620
    %v1622 = vsel %vm1608, %v1619, %v1621
    %v1623 = vshll.u32 %v1583, 8
    %v1624 = vmul.u32.u64.compose %v1623, %v1622
    %v1625 = vextract.low.u32 %v1624
    %v1626 = vextract.high.u32 %v1624
    %v1627 = vmul.u32.u64.compose %v1623, %v1618
    %v1628 = vextract.low.u32 %v1627
    %v1629 = vextract.high.u32 %v1627
    %v1630 = vmul.u32 %v1623, %v1614
    %v1631 = vadd.s32 %v1626, %v1628
    %vm1632 = vc.u32 %v1626, %v1628
    %v1633 = vadd.s32 %v1629, 1
    %v1634 = vsel %vm1632, %v1633, %v1629
    %v1635 = vadd.s32 %v1630, %v1634
    %v1636 = vadd.s32 %v1635, 536870912
    %v1637 = vshrl.u32 %v1636, 30
    %v1638 = vshll.u32 %v1637, 30
    %v1639 = vsub.s32 %v1635, %v1638
    %vm1640 = vcmp.lt.s32.totalorder %v1639, 0
    %v1641 = vsub.s32 0, %v1639
    %v1642 = vsel %vm1640, %v1641, %v1639
    %v1643 = vclz %v1642
    %v1644 = vsub.s32 %v1643, 2
    %vm1645 = vcmp.gt.s32.totalorder 0, %v1644
    %v1646 = vsel %vm1645, 0, %v1644
    %v1647 = vsub.s32 32, %v1646
    %v1648 = vshll.u32 %v1639, %v1646
    %v1649 = vshrl.u32 %v1631, %v1647
    %v1650 = vor.u32 %v1648, %v1649
    %v1651 = vsub.s32 4294967266, %v1646
    %v1652 = vadd.s32 %v1651, 127
    %v1653 = vshll.u32 %v1652, 23
    %v1654 = vor.u32 4788187, %v1653
    %v1655 = vand.u32 2147483647, %v1654
    %v1657 = vcvt.s32.f32 %v1650
    %v1658 = vmul.f32 %v1657, %v1655
    %v1659 = vxor.u32 %v1658, 2147483648
    %v1660 = vsel %vm1577, %v1659, %v1658
    %v1661 = vsub.s32 4, %v1637
    %v1662 = vsel %vm1577, %v1661, %v1637
    %v1663 = vsel %vm1576, %v259, %v1660
    %v1664 = vsel %vm1576, 0, %v1662
    %v1665 = vcosq.f32.pop %v1663
    %v1666 = vsinq.f32.pop %v1663
    %vm1667 = vweird.f32 %v259
    %v1668 = vadd.s32 %v1664, 3
    %v1669 = vand.u32 %v1668, 3
    %vm1670 = vcmp.lt.s32.totalorder %v1669, 2
    %vm1671 = vcmp.eq.s32.totalorder %v1669, 0
    %v1672 = vxor.u32 %v1666, 2147483648
    %v1673 = vsel %vm1671, %v1665, %v1672
    %vm1674 = vcmp.eq.s32.totalorder %v1669, 2
    %v1675 = vxor.u32 %v1665, 2147483648
    %v1676 = vsel %vm1674, %v1675, %v1666
    %v1677 = vsel %vm1670, %v1673, %v1676
    %v1678 = vsel %vm1667, nan, %v1677
    %v1679 = vand.u32 2147483647, %v264
    %vm1680 = vcmp.le.f32.partialorder %v1679, 0.7853982
    %vm1681 = vcmp.lt.s32.totalorder %v264, 0
    %v1682 = vand.u32 %v264, 2139095040
    %v1683 = vshrl.u32 %v1682, 23
    %v1684 = vsub.s32 %v1683, 127
    %v1685 = vand.u32 2147483647, %v264
    %v1686 = vand.u32 %v1685, 8388607
    %v1687 = vor.u32 %v1686, 8388608
    %v1688 = vsub.s32 0, %v1687
    %v1689 = vadd.s32 %v1684, 1
    %vm1690 = vcmp.gt.s32.totalorder %v1689, 0
    %v1691 = vsel %vm1690, %v1689, 0
    %v1692 = vshrl.u32 %v1691, 5
    %v1693 = vand.u32 %v1691, 31
    %v1694 = vsub.s32 32, %v1693
    %v1695 = vshrl.u32 683565275, %v1694
    %v1696 = vshll.u32 683565275, %v1693
    %v1697 = vshrl.u32 2475754826, %v1694
    %v1698 = vor.u32 %v1696, %v1697
    %v1699 = vshll.u32 2475754826, %v1693
    %v1700 = vshrl.u32 2131351028, %v1694
    %v1701 = vor.u32 %v1699, %v1700
    %v1702 = vshll.u32 2131351028, %v1693
    %v1703 = vshrl.u32 2102212464, %v1694
    %v1704 = vor.u32 %v1702, %v1703
    %v1705 = vshll.u32 2102212464, %v1693
    %v1706 = vshrl.u32 920167782, %v1694
    %v1707 = vor.u32 %v1705, %v1706
    %v1708 = vshll.u32 920167782, %v1693
    %v1709 = vshrl.u32 1326507024, %v1694
    %v1710 = vor.u32 %v1708, %v1709
    %vm1711 = vcmp.lt.s32.totalorder %v1692, 1
    %vm1712 = vcmp.lt.s32.totalorder %v1692, 2
    %vm1713 = vcmp.lt.s32.totalorder %v1692, 3
    %vm1714 = vcmp.lt.s32.totalorder %v1692, 4
    %v1715 = vsel %vm1711, %v1695, %v1698
    %v1716 = vsel %vm1714, %v1704, 2102212464
    %v1717 = vsel %vm1713, %v1701, %v1716
    %v1718 = vsel %vm1712, %v1715, %v1717
    %v1719 = vsel %vm1711, %v1698, %v1701
    %v1720 = vsel %vm1714, %v1707, 920167782
    %v1721 = vsel %vm1713, %v1704, %v1720
    %v1722 = vsel %vm1712, %v1719, %v1721
    %v1723 = vsel %vm1711, %v1701, %v1704
    %v1724 = vsel %vm1714, %v1710, 1326507024
    %v1725 = vsel %vm1713, %v1707, %v1724
    %v1726 = vsel %vm1712, %v1723, %v1725
    %v1727 = vshll.u32 %v1687, 8
    %v1728 = vmul.u32.u64.compose %v1727, %v1726
    %v1729 = vextract.low.u32 %v1728
    %v1730 = vextract.high.u32 %v1728
    %v1731 = vmul.u32.u64.compose %v1727, %v1722
    %v1732 = vextract.low.u32 %v1731
    %v1733 = vextract.high.u32 %v1731
    %v1734 = vmul.u32 %v1727, %v1718
    %v1735 = vadd.s32 %v1730, %v1732
    %vm1736 = vc.u32 %v1730, %v1732
    %v1737 = vadd.s32 %v1733, 1
    %v1738 = vsel %vm1736, %v1737, %v1733
    %v1739 = vadd.s32 %v1734, %v1738
    %v1740 = vadd.s32 %v1739, 536870912
    %v1741 = vshrl.u32 %v1740, 30
    %v1742 = vshll.u32 %v1741, 30
    %v1743 = vsub.s32 %v1739, %v1742
    %vm1744 = vcmp.lt.s32.totalorder %v1743, 0
    %v1745 = vsub.s32 0, %v1743
    %v1746 = vsel %vm1744, %v1745, %v1743
    %v1747 = vclz %v1746
    %v1748 = vsub.s32 %v1747, 2
    %vm1749 = vcmp.gt.s32.totalorder 0, %v1748
    %v1750 = vsel %vm1749, 0, %v1748
    %v1751 = vsub.s32 32, %v1750
    %v1752 = vshll.u32 %v1743, %v1750
    %v1753 = vshrl.u32 %v1735, %v1751
    %v1754 = vor.u32 %v1752, %v1753
    %v1755 = vsub.s32 4294967266, %v1750
    %v1756 = vadd.s32 %v1755, 127
    %v1757 = vshll.u32 %v1756, 23
    %v1758 = vor.u32 4788187, %v1757
    %v1759 = vand.u32 2147483647, %v1758
    %v1761 = vcvt.s32.f32 %v1754
    %v1762 = vmul.f32 %v1761, %v1759
    %v1763 = vxor.u32 %v1762, 2147483648
    %v1764 = vsel %vm1681, %v1763, %v1762
    %v1765 = vsub.s32 4, %v1741
    %v1766 = vsel %vm1681, %v1765, %v1741
    %v1767 = vsel %vm1680, %v264, %v1764
    %v1768 = vsel %vm1680, 0, %v1766
    %v1769 = vcosq.f32.pop %v1767
    %v1770 = vsinq.f32.pop %v1767
    %vm1771 = vweird.f32 %v264
    %v1772 = vadd.s32 %v1768, 3
    %v1773 = vand.u32 %v1772, 3
    %vm1774 = vcmp.lt.s32.totalorder %v1773, 2
    %vm1775 = vcmp.eq.s32.totalorder %v1773, 0
    %v1776 = vxor.u32 %v1770, 2147483648
    %v1777 = vsel %vm1775, %v1769, %v1776
    %vm1778 = vcmp.eq.s32.totalorder %v1773, 2
    %v1779 = vxor.u32 %v1769, 2147483648
    %v1780 = vsel %vm1778, %v1779, %v1770
    %v1781 = vsel %vm1774, %v1777, %v1780
    %v1782 = vsel %vm1771, nan, %v1781
    %v1783 = vand.u32 2147483647, %v269
    %vm1784 = vcmp.le.f32.partialorder %v1783, 0.7853982
    %vm1785 = vcmp.lt.s32.totalorder %v269, 0
    %v1786 = vand.u32 %v269, 2139095040
    %v1787 = vshrl.u32 %v1786, 23
    %v1788 = vsub.s32 %v1787, 127
    %v1789 = vand.u32 2147483647, %v269
    %v1790 = vand.u32 %v1789, 8388607
    %v1791 = vor.u32 %v1790, 8388608
    %v1792 = vsub.s32 0, %v1791
    %v1793 = vadd.s32 %v1788, 1
    %vm1794 = vcmp.gt.s32.totalorder %v1793, 0
    %v1795 = vsel %vm1794, %v1793, 0
    %v1796 = vshrl.u32 %v1795, 5
    %v1797 = vand.u32 %v1795, 31
    %v1798 = vsub.s32 32, %v1797
    %v1799 = vshrl.u32 683565275, %v1798
    %v1800 = vshll.u32 683565275, %v1797
    %v1801 = vshrl.u32 2475754826, %v1798
    %v1802 = vor.u32 %v1800, %v1801
    %v1803 = vshll.u32 2475754826, %v1797
    %v1804 = vshrl.u32 2131351028, %v1798
    %v1805 = vor.u32 %v1803, %v1804
    %v1806 = vshll.u32 2131351028, %v1797
    %v1807 = vshrl.u32 2102212464, %v1798
    %v1808 = vor.u32 %v1806, %v1807
    %v1809 = vshll.u32 2102212464, %v1797
    %v1810 = vshrl.u32 920167782, %v1798
    %v1811 = vor.u32 %v1809, %v1810
    %v1812 = vshll.u32 920167782, %v1797
    %v1813 = vshrl.u32 1326507024, %v1798
    %v1814 = vor.u32 %v1812, %v1813
    %vm1815 = vcmp.lt.s32.totalorder %v1796, 1
    %vm1816 = vcmp.lt.s32.totalorder %v1796, 2
    %vm1817 = vcmp.lt.s32.totalorder %v1796, 3
    %vm1818 = vcmp.lt.s32.totalorder %v1796, 4
    %v1819 = vsel %vm1815, %v1799, %v1802
    %v1820 = vsel %vm1818, %v1808, 2102212464
    %v1821 = vsel %vm1817, %v1805, %v1820
    %v1822 = vsel %vm1816, %v1819, %v1821
    %v1823 = vsel %vm1815, %v1802, %v1805
    %v1824 = vsel %vm1818, %v1811, 920167782
    %v1825 = vsel %vm1817, %v1808, %v1824
    %v1826 = vsel %vm1816, %v1823, %v1825
    %v1827 = vsel %vm1815, %v1805, %v1808
    %v1828 = vsel %vm1818, %v1814, 1326507024
    %v1829 = vsel %vm1817, %v1811, %v1828
    %v1830 = vsel %vm1816, %v1827, %v1829
    %v1831 = vshll.u32 %v1791, 8
    %v1832 = vmul.u32.u64.compose %v1831, %v1830
    %v1833 = vextract.low.u32 %v1832
    %v1834 = vextract.high.u32 %v1832
    %v1835 = vmul.u32.u64.compose %v1831, %v1826
    %v1836 = vextract.low.u32 %v1835
    %v1837 = vextract.high.u32 %v1835
    %v1838 = vmul.u32 %v1831, %v1822
    %v1839 = vadd.s32 %v1834, %v1836
    %vm1840 = vc.u32 %v1834, %v1836
    %v1841 = vadd.s32 %v1837, 1
    %v1842 = vsel %vm1840, %v1841, %v1837
    %v1843 = vadd.s32 %v1838, %v1842
    %v1844 = vadd.s32 %v1843, 536870912
    %v1845 = vshrl.u32 %v1844, 30
    %v1846 = vshll.u32 %v1845, 30
    %v1847 = vsub.s32 %v1843, %v1846
    %vm1848 = vcmp.lt.s32.totalorder %v1847, 0
    %v1849 = vsub.s32 0, %v1847
    %v1850 = vsel %vm1848, %v1849, %v1847
    %v1851 = vclz %v1850
    %v1852 = vsub.s32 %v1851, 2
    %vm1853 = vcmp.gt.s32.totalorder 0, %v1852
    %v1854 = vsel %vm1853, 0, %v1852
    %v1855 = vsub.s32 32, %v1854
    %v1856 = vshll.u32 %v1847, %v1854
    %v1857 = vshrl.u32 %v1839, %v1855
    %v1858 = vor.u32 %v1856, %v1857
    %v1859 = vsub.s32 4294967266, %v1854
    %v1860 = vadd.s32 %v1859, 127
    %v1861 = vshll.u32 %v1860, 23
    %v1862 = vor.u32 4788187, %v1861
    %v1863 = vand.u32 2147483647, %v1862
    %v1865 = vcvt.s32.f32 %v1858
    %v1866 = vmul.f32 %v1865, %v1863
    %v1867 = vxor.u32 %v1866, 2147483648
    %v1868 = vsel %vm1785, %v1867, %v1866
    %v1869 = vsub.s32 4, %v1845
    %v1870 = vsel %vm1785, %v1869, %v1845
    %v1871 = vsel %vm1784, %v269, %v1868
    %v1872 = vsel %vm1784, 0, %v1870
    %v1873 = vcosq.f32.pop %v1871
    %v1874 = vsinq.f32.pop %v1871
    %vm1875 = vweird.f32 %v269
    %v1876 = vadd.s32 %v1872, 3
    %v1877 = vand.u32 %v1876, 3
    %vm1878 = vcmp.lt.s32.totalorder %v1877, 2
    %vm1879 = vcmp.eq.s32.totalorder %v1877, 0
    %v1880 = vxor.u32 %v1874, 2147483648
    %v1881 = vsel %vm1879, %v1873, %v1880
    %vm1882 = vcmp.eq.s32.totalorder %v1877, 2
    %v1883 = vxor.u32 %v1873, 2147483648
    %v1884 = vsel %vm1882, %v1883, %v1874
    %v1885 = vsel %vm1878, %v1881, %v1884
    %v1886 = vsel %vm1875, nan, %v1885
    %v1887 = vand.u32 2147483647, %v274
    %vm1888 = vcmp.le.f32.partialorder %v1887, 0.7853982
    %vm1889 = vcmp.lt.s32.totalorder %v274, 0
    %v1890 = vand.u32 %v274, 2139095040
    %v1891 = vshrl.u32 %v1890, 23
    %v1892 = vsub.s32 %v1891, 127
    %v1893 = vand.u32 2147483647, %v274
    %v1894 = vand.u32 %v1893, 8388607
    %v1895 = vor.u32 %v1894, 8388608
    %v1896 = vsub.s32 0, %v1895
    %v1897 = vadd.s32 %v1892, 1
    %vm1898 = vcmp.gt.s32.totalorder %v1897, 0
    %v1899 = vsel %vm1898, %v1897, 0
    %v1900 = vshrl.u32 %v1899, 5
    %v1901 = vand.u32 %v1899, 31
    %v1902 = vsub.s32 32, %v1901
    %v1903 = vshrl.u32 683565275, %v1902
    %v1904 = vshll.u32 683565275, %v1901
    %v1905 = vshrl.u32 2475754826, %v1902
    %v1906 = vor.u32 %v1904, %v1905
    %v1907 = vshll.u32 2475754826, %v1901
    %v1908 = vshrl.u32 2131351028, %v1902
    %v1909 = vor.u32 %v1907, %v1908
    %v1910 = vshll.u32 2131351028, %v1901
    %v1911 = vshrl.u32 2102212464, %v1902
    %v1912 = vor.u32 %v1910, %v1911
    %v1913 = vshll.u32 2102212464, %v1901
    %v1914 = vshrl.u32 920167782, %v1902
    %v1915 = vor.u32 %v1913, %v1914
    %v1916 = vshll.u32 920167782, %v1901
    %v1917 = vshrl.u32 1326507024, %v1902
    %v1918 = vor.u32 %v1916, %v1917
    %vm1919 = vcmp.lt.s32.totalorder %v1900, 1
    %vm1920 = vcmp.lt.s32.totalorder %v1900, 2
    %vm1921 = vcmp.lt.s32.totalorder %v1900, 3
    %vm1922 = vcmp.lt.s32.totalorder %v1900, 4
    %v1923 = vsel %vm1919, %v1903, %v1906
    %v1924 = vsel %vm1922, %v1912, 2102212464
    %v1925 = vsel %vm1921, %v1909, %v1924
    %v1926 = vsel %vm1920, %v1923, %v1925
    %v1927 = vsel %vm1919, %v1906, %v1909
    %v1928 = vsel %vm1922, %v1915, 920167782
    %v1929 = vsel %vm1921, %v1912, %v1928
    %v1930 = vsel %vm1920, %v1927, %v1929
    %v1931 = vsel %vm1919, %v1909, %v1912
    %v1932 = vsel %vm1922, %v1918, 1326507024
    %v1933 = vsel %vm1921, %v1915, %v1932
    %v1934 = vsel %vm1920, %v1931, %v1933
    %v1935 = vshll.u32 %v1895, 8
    %v1936 = vmul.u32.u64.compose %v1935, %v1934
    %v1937 = vextract.low.u32 %v1936
    %v1938 = vextract.high.u32 %v1936
    %v1939 = vmul.u32.u64.compose %v1935, %v1930
    %v1940 = vextract.low.u32 %v1939
    %v1941 = vextract.high.u32 %v1939
    %v1942 = vmul.u32 %v1935, %v1926
    %v1943 = vadd.s32 %v1938, %v1940
    %vm1944 = vc.u32 %v1938, %v1940
    %v1945 = vadd.s32 %v1941, 1
    %v1946 = vsel %vm1944, %v1945, %v1941
    %v1947 = vadd.s32 %v1942, %v1946
    %v1948 = vadd.s32 %v1947, 536870912
    %v1949 = vshrl.u32 %v1948, 30
    %v1950 = vshll.u32 %v1949, 30
    %v1951 = vsub.s32 %v1947, %v1950
    %vm1952 = vcmp.lt.s32.totalorder %v1951, 0
    %v1953 = vsub.s32 0, %v1951
    %v1954 = vsel %vm1952, %v1953, %v1951
    %v1955 = vclz %v1954
    %v1956 = vsub.s32 %v1955, 2
    %vm1957 = vcmp.gt.s32.totalorder 0, %v1956
    %v1958 = vsel %vm1957, 0, %v1956
    %v1959 = vsub.s32 32, %v1958
    %v1960 = vshll.u32 %v1951, %v1958
    %v1961 = vshrl.u32 %v1943, %v1959
    %v1962 = vor.u32 %v1960, %v1961
    %v1963 = vsub.s32 4294967266, %v1958
    %v1964 = vadd.s32 %v1963, 127
    %v1965 = vshll.u32 %v1964, 23
    %v1966 = vor.u32 4788187, %v1965
    %v1967 = vand.u32 2147483647, %v1966
    %v1969 = vcvt.s32.f32 %v1962
    %v1970 = vmul.f32 %v1969, %v1967
    %v1971 = vxor.u32 %v1970, 2147483648
    %v1972 = vsel %vm1889, %v1971, %v1970
    %v1973 = vsub.s32 4, %v1949
    %v1974 = vsel %vm1889, %v1973, %v1949
    %v1975 = vsel %vm1888, %v274, %v1972
    %v1976 = vsel %vm1888, 0, %v1974
    %v1977 = vcosq.f32.pop %v1975
    %v1978 = vsinq.f32.pop %v1975
    %vm1979 = vweird.f32 %v274
    %v1980 = vadd.s32 %v1976, 3
    %v1981 = vand.u32 %v1980, 3
    %vm1982 = vcmp.lt.s32.totalorder %v1981, 2
    %vm1983 = vcmp.eq.s32.totalorder %v1981, 0
    %v1984 = vxor.u32 %v1978, 2147483648
    %v1985 = vsel %vm1983, %v1977, %v1984
    %vm1986 = vcmp.eq.s32.totalorder %v1981, 2
    %v1987 = vxor.u32 %v1977, 2147483648
    %v1988 = vsel %vm1986, %v1987, %v1978
    %v1989 = vsel %vm1982, %v1985, %v1988
    %v1990 = vsel %vm1979, nan, %v1989
    %v1991 = vand.u32 2147483647, %v279
    %vm1992 = vcmp.le.f32.partialorder %v1991, 0.7853982
    %vm1993 = vcmp.lt.s32.totalorder %v279, 0
    %v1994 = vand.u32 %v279, 2139095040
    %v1995 = vshrl.u32 %v1994, 23
    %v1996 = vsub.s32 %v1995, 127
    %v1997 = vand.u32 2147483647, %v279
    %v1998 = vand.u32 %v1997, 8388607
    %v1999 = vor.u32 %v1998, 8388608
    %v2000 = vsub.s32 0, %v1999
    %v2001 = vadd.s32 %v1996, 1
    %vm2002 = vcmp.gt.s32.totalorder %v2001, 0
    %v2003 = vsel %vm2002, %v2001, 0
    %v2004 = vshrl.u32 %v2003, 5
    %v2005 = vand.u32 %v2003, 31
    %v2006 = vsub.s32 32, %v2005
    %v2007 = vshrl.u32 683565275, %v2006
    %v2008 = vshll.u32 683565275, %v2005
    %v2009 = vshrl.u32 2475754826, %v2006
    %v2010 = vor.u32 %v2008, %v2009
    %v2011 = vshll.u32 2475754826, %v2005
    %v2012 = vshrl.u32 2131351028, %v2006
    %v2013 = vor.u32 %v2011, %v2012
    %v2014 = vshll.u32 2131351028, %v2005
    %v2015 = vshrl.u32 2102212464, %v2006
    %v2016 = vor.u32 %v2014, %v2015
    %v2017 = vshll.u32 2102212464, %v2005
    %v2018 = vshrl.u32 920167782, %v2006
    %v2019 = vor.u32 %v2017, %v2018
    %v2020 = vshll.u32 920167782, %v2005
    %v2021 = vshrl.u32 1326507024, %v2006
    %v2022 = vor.u32 %v2020, %v2021
    %vm2023 = vcmp.lt.s32.totalorder %v2004, 1
    %vm2024 = vcmp.lt.s32.totalorder %v2004, 2
    %vm2025 = vcmp.lt.s32.totalorder %v2004, 3
    %vm2026 = vcmp.lt.s32.totalorder %v2004, 4
    %v2027 = vsel %vm2023, %v2007, %v2010
    %v2028 = vsel %vm2026, %v2016, 2102212464
    %v2029 = vsel %vm2025, %v2013, %v2028
    %v2030 = vsel %vm2024, %v2027, %v2029
    %v2031 = vsel %vm2023, %v2010, %v2013
    %v2032 = vsel %vm2026, %v2019, 920167782
    %v2033 = vsel %vm2025, %v2016, %v2032
    %v2034 = vsel %vm2024, %v2031, %v2033
    %v2035 = vsel %vm2023, %v2013, %v2016
    %v2036 = vsel %vm2026, %v2022, 1326507024
    %v2037 = vsel %vm2025, %v2019, %v2036
    %v2038 = vsel %vm2024, %v2035, %v2037
    %v2039 = vshll.u32 %v1999, 8
    %v2040 = vmul.u32.u64.compose %v2039, %v2038
    %v2041 = vextract.low.u32 %v2040
    %v2042 = vextract.high.u32 %v2040
    %v2043 = vmul.u32.u64.compose %v2039, %v2034
    %v2044 = vextract.low.u32 %v2043
    %v2045 = vextract.high.u32 %v2043
    %v2046 = vmul.u32 %v2039, %v2030
    %v2047 = vadd.s32 %v2042, %v2044
    %vm2048 = vc.u32 %v2042, %v2044
    %v2049 = vadd.s32 %v2045, 1
    %v2050 = vsel %vm2048, %v2049, %v2045
    %v2051 = vadd.s32 %v2046, %v2050
    %v2052 = vadd.s32 %v2051, 536870912
    %v2053 = vshrl.u32 %v2052, 30
    %v2054 = vshll.u32 %v2053, 30
    %v2055 = vsub.s32 %v2051, %v2054
    %vm2056 = vcmp.lt.s32.totalorder %v2055, 0
    %v2057 = vsub.s32 0, %v2055
    %v2058 = vsel %vm2056, %v2057, %v2055
    %v2059 = vclz %v2058
    %v2060 = vsub.s32 %v2059, 2
    %vm2061 = vcmp.gt.s32.totalorder 0, %v2060
    %v2062 = vsel %vm2061, 0, %v2060
    %v2063 = vsub.s32 32, %v2062
    %v2064 = vshll.u32 %v2055, %v2062
    %v2065 = vshrl.u32 %v2047, %v2063
    %v2066 = vor.u32 %v2064, %v2065
    %v2067 = vsub.s32 4294967266, %v2062
    %v2068 = vadd.s32 %v2067, 127
    %v2069 = vshll.u32 %v2068, 23
    %v2070 = vor.u32 4788187, %v2069
    %v2071 = vand.u32 2147483647, %v2070
    %v2073 = vcvt.s32.f32 %v2066
    %v2074 = vmul.f32 %v2073, %v2071
    %v2075 = vxor.u32 %v2074, 2147483648
    %v2076 = vsel %vm1993, %v2075, %v2074
    %v2077 = vsub.s32 4, %v2053
    %v2078 = vsel %vm1993, %v2077, %v2053
    %v2079 = vsel %vm1992, %v279, %v2076
    %v2080 = vsel %vm1992, 0, %v2078
    %v2081 = vcosq.f32.pop %v2079
    %v2082 = vsinq.f32.pop %v2079
    %vm2083 = vweird.f32 %v279
    %v2084 = vadd.s32 %v2080, 3
    %v2085 = vand.u32 %v2084, 3
    %vm2086 = vcmp.lt.s32.totalorder %v2085, 2
    %vm2087 = vcmp.eq.s32.totalorder %v2085, 0
    %v2088 = vxor.u32 %v2082, 2147483648
    %v2089 = vsel %vm2087, %v2081, %v2088
    %vm2090 = vcmp.eq.s32.totalorder %v2085, 2
    %v2091 = vxor.u32 %v2081, 2147483648
    %v2092 = vsel %vm2090, %v2091, %v2082
    %v2093 = vsel %vm2086, %v2089, %v2092
    %v2094 = vsel %vm2083, nan, %v2093
    %v2095 = vand.u32 2147483647, %v284
    %vm2096 = vcmp.le.f32.partialorder %v2095, 0.7853982
    %vm2097 = vcmp.lt.s32.totalorder %v284, 0
    %v2098 = vand.u32 %v284, 2139095040
    %v2099 = vshrl.u32 %v2098, 23
    %v2100 = vsub.s32 %v2099, 127
    %v2101 = vand.u32 2147483647, %v284
    %v2102 = vand.u32 %v2101, 8388607
    %v2103 = vor.u32 %v2102, 8388608
    %v2104 = vsub.s32 0, %v2103
    %v2105 = vadd.s32 %v2100, 1
    %vm2106 = vcmp.gt.s32.totalorder %v2105, 0
    %v2107 = vsel %vm2106, %v2105, 0
    %v2108 = vshrl.u32 %v2107, 5
    %v2109 = vand.u32 %v2107, 31
    %v2110 = vsub.s32 32, %v2109
    %v2111 = vshrl.u32 683565275, %v2110
    %v2112 = vshll.u32 683565275, %v2109
    %v2113 = vshrl.u32 2475754826, %v2110
    %v2114 = vor.u32 %v2112, %v2113
    %v2115 = vshll.u32 2475754826, %v2109
    %v2116 = vshrl.u32 2131351028, %v2110
    %v2117 = vor.u32 %v2115, %v2116
    %v2118 = vshll.u32 2131351028, %v2109
    %v2119 = vshrl.u32 2102212464, %v2110
    %v2120 = vor.u32 %v2118, %v2119
    %v2121 = vshll.u32 2102212464, %v2109
    %v2122 = vshrl.u32 920167782, %v2110
    %v2123 = vor.u32 %v2121, %v2122
    %v2124 = vshll.u32 920167782, %v2109
    %v2125 = vshrl.u32 1326507024, %v2110
    %v2126 = vor.u32 %v2124, %v2125
    %vm2127 = vcmp.lt.s32.totalorder %v2108, 1
    %vm2128 = vcmp.lt.s32.totalorder %v2108, 2
    %vm2129 = vcmp.lt.s32.totalorder %v2108, 3
    %vm2130 = vcmp.lt.s32.totalorder %v2108, 4
    %v2131 = vsel %vm2127, %v2111, %v2114
    %v2132 = vsel %vm2130, %v2120, 2102212464
    %v2133 = vsel %vm2129, %v2117, %v2132
    %v2134 = vsel %vm2128, %v2131, %v2133
    %v2135 = vsel %vm2127, %v2114, %v2117
    %v2136 = vsel %vm2130, %v2123, 920167782
    %v2137 = vsel %vm2129, %v2120, %v2136
    %v2138 = vsel %vm2128, %v2135, %v2137
    %v2139 = vsel %vm2127, %v2117, %v2120
    %v2140 = vsel %vm2130, %v2126, 1326507024
    %v2141 = vsel %vm2129, %v2123, %v2140
    %v2142 = vsel %vm2128, %v2139, %v2141
    %v2143 = vshll.u32 %v2103, 8
    %v2144 = vmul.u32.u64.compose %v2143, %v2142
    %v2145 = vextract.low.u32 %v2144
    %v2146 = vextract.high.u32 %v2144
    %v2147 = vmul.u32.u64.compose %v2143, %v2138
    %v2148 = vextract.low.u32 %v2147
    %v2149 = vextract.high.u32 %v2147
    %v2150 = vmul.u32 %v2143, %v2134
    %v2151 = vadd.s32 %v2146, %v2148
    %vm2152 = vc.u32 %v2146, %v2148
    %v2153 = vadd.s32 %v2149, 1
    %v2154 = vsel %vm2152, %v2153, %v2149
    %v2155 = vadd.s32 %v2150, %v2154
    %v2156 = vadd.s32 %v2155, 536870912
    %v2157 = vshrl.u32 %v2156, 30
    %v2158 = vshll.u32 %v2157, 30
    %v2159 = vsub.s32 %v2155, %v2158
    %vm2160 = vcmp.lt.s32.totalorder %v2159, 0
    %v2161 = vsub.s32 0, %v2159
    %v2162 = vsel %vm2160, %v2161, %v2159
    %v2163 = vclz %v2162
    %v2164 = vsub.s32 %v2163, 2
    %vm2165 = vcmp.gt.s32.totalorder 0, %v2164
    %v2166 = vsel %vm2165, 0, %v2164
    %v2167 = vsub.s32 32, %v2166
    %v2168 = vshll.u32 %v2159, %v2166
    %v2169 = vshrl.u32 %v2151, %v2167
    %v2170 = vor.u32 %v2168, %v2169
    %v2171 = vsub.s32 4294967266, %v2166
    %v2172 = vadd.s32 %v2171, 127
    %v2173 = vshll.u32 %v2172, 23
    %v2174 = vor.u32 4788187, %v2173
    %v2175 = vand.u32 2147483647, %v2174
    %v2177 = vcvt.s32.f32 %v2170
    %v2178 = vmul.f32 %v2177, %v2175
    %v2179 = vxor.u32 %v2178, 2147483648
    %v2180 = vsel %vm2097, %v2179, %v2178
    %v2181 = vsub.s32 4, %v2157
    %v2182 = vsel %vm2097, %v2181, %v2157
    %v2183 = vsel %vm2096, %v284, %v2180
    %v2184 = vsel %vm2096, 0, %v2182
    %v2185 = vcosq.f32.pop %v2183
    %v2186 = vsinq.f32.pop %v2183
    %vm2187 = vweird.f32 %v284
    %v2188 = vadd.s32 %v2184, 3
    %v2189 = vand.u32 %v2188, 3
    %vm2190 = vcmp.lt.s32.totalorder %v2189, 2
    %vm2191 = vcmp.eq.s32.totalorder %v2189, 0
    %v2192 = vxor.u32 %v2186, 2147483648
    %v2193 = vsel %vm2191, %v2185, %v2192
    %vm2194 = vcmp.eq.s32.totalorder %v2189, 2
    %v2195 = vxor.u32 %v2185, 2147483648
    %v2196 = vsel %vm2194, %v2195, %v2186
    %v2197 = vsel %vm2190, %v2193, %v2196
    %v2198 = vsel %vm2187, nan, %v2197
    %v2199 = vand.u32 2147483647, %v289
    %vm2200 = vcmp.le.f32.partialorder %v2199, 0.7853982
    %vm2201 = vcmp.lt.s32.totalorder %v289, 0
    %v2202 = vand.u32 %v289, 2139095040
    %v2203 = vshrl.u32 %v2202, 23
    %v2204 = vsub.s32 %v2203, 127
    %v2205 = vand.u32 2147483647, %v289
    %v2206 = vand.u32 %v2205, 8388607
    %v2207 = vor.u32 %v2206, 8388608
    %v2208 = vsub.s32 0, %v2207
    %v2209 = vadd.s32 %v2204, 1
    %vm2210 = vcmp.gt.s32.totalorder %v2209, 0
    %v2211 = vsel %vm2210, %v2209, 0
    %v2212 = vshrl.u32 %v2211, 5
    %v2213 = vand.u32 %v2211, 31
    %v2214 = vsub.s32 32, %v2213
    %v2215 = vshrl.u32 683565275, %v2214
    %v2216 = vshll.u32 683565275, %v2213
    %v2217 = vshrl.u32 2475754826, %v2214
    %v2218 = vor.u32 %v2216, %v2217
    %v2219 = vshll.u32 2475754826, %v2213
    %v2220 = vshrl.u32 2131351028, %v2214
    %v2221 = vor.u32 %v2219, %v2220
    %v2222 = vshll.u32 2131351028, %v2213
    %v2223 = vshrl.u32 2102212464, %v2214
    %v2224 = vor.u32 %v2222, %v2223
    %v2225 = vshll.u32 2102212464, %v2213
    %v2226 = vshrl.u32 920167782, %v2214
    %v2227 = vor.u32 %v2225, %v2226
    %v2228 = vshll.u32 920167782, %v2213
    %v2229 = vshrl.u32 1326507024, %v2214
    %v2230 = vor.u32 %v2228, %v2229
    %vm2231 = vcmp.lt.s32.totalorder %v2212, 1
    %vm2232 = vcmp.lt.s32.totalorder %v2212, 2
    %vm2233 = vcmp.lt.s32.totalorder %v2212, 3
    %vm2234 = vcmp.lt.s32.totalorder %v2212, 4
    %v2235 = vsel %vm2231, %v2215, %v2218
    %v2236 = vsel %vm2234, %v2224, 2102212464
    %v2237 = vsel %vm2233, %v2221, %v2236
    %v2238 = vsel %vm2232, %v2235, %v2237
    %v2239 = vsel %vm2231, %v2218, %v2221
    %v2240 = vsel %vm2234, %v2227, 920167782
    %v2241 = vsel %vm2233, %v2224, %v2240
    %v2242 = vsel %vm2232, %v2239, %v2241
    %v2243 = vsel %vm2231, %v2221, %v2224
    %v2244 = vsel %vm2234, %v2230, 1326507024
    %v2245 = vsel %vm2233, %v2227, %v2244
    %v2246 = vsel %vm2232, %v2243, %v2245
    %v2247 = vshll.u32 %v2207, 8
    %v2248 = vmul.u32.u64.compose %v2247, %v2246
    %v2249 = vextract.low.u32 %v2248
    %v2250 = vextract.high.u32 %v2248
    %v2251 = vmul.u32.u64.compose %v2247, %v2242
    %v2252 = vextract.low.u32 %v2251
    %v2253 = vextract.high.u32 %v2251
    %v2254 = vmul.u32 %v2247, %v2238
    %v2255 = vadd.s32 %v2250, %v2252
    %vm2256 = vc.u32 %v2250, %v2252
    %v2257 = vadd.s32 %v2253, 1
    %v2258 = vsel %vm2256, %v2257, %v2253
    %v2259 = vadd.s32 %v2254, %v2258
    %v2260 = vadd.s32 %v2259, 536870912
    %v2261 = vshrl.u32 %v2260, 30
    %v2262 = vshll.u32 %v2261, 30
    %v2263 = vsub.s32 %v2259, %v2262
    %vm2264 = vcmp.lt.s32.totalorder %v2263, 0
    %v2265 = vsub.s32 0, %v2263
    %v2266 = vsel %vm2264, %v2265, %v2263
    %v2267 = vclz %v2266
    %v2268 = vsub.s32 %v2267, 2
    %vm2269 = vcmp.gt.s32.totalorder 0, %v2268
    %v2270 = vsel %vm2269, 0, %v2268
    %v2271 = vsub.s32 32, %v2270
    %v2272 = vshll.u32 %v2263, %v2270
    %v2273 = vshrl.u32 %v2255, %v2271
    %v2274 = vor.u32 %v2272, %v2273
    %v2275 = vsub.s32 4294967266, %v2270
    %v2276 = vadd.s32 %v2275, 127
    %v2277 = vshll.u32 %v2276, 23
    %v2278 = vor.u32 4788187, %v2277
    %v2279 = vand.u32 2147483647, %v2278
    %v2281 = vcvt.s32.f32 %v2274
    %v2282 = vmul.f32 %v2281, %v2279
    %v2283 = vxor.u32 %v2282, 2147483648
    %v2284 = vsel %vm2201, %v2283, %v2282
    %v2285 = vsub.s32 4, %v2261
    %v2286 = vsel %vm2201, %v2285, %v2261
    %v2287 = vsel %vm2200, %v289, %v2284
    %v2288 = vsel %vm2200, 0, %v2286
    %v2289 = vcosq.f32.pop %v2287
    %v2290 = vsinq.f32.pop %v2287
    %vm2291 = vweird.f32 %v289
    %v2292 = vadd.s32 %v2288, 3
    %v2293 = vand.u32 %v2292, 3
    %vm2294 = vcmp.lt.s32.totalorder %v2293, 2
    %vm2295 = vcmp.eq.s32.totalorder %v2293, 0
    %v2296 = vxor.u32 %v2290, 2147483648
    %v2297 = vsel %vm2295, %v2289, %v2296
    %vm2298 = vcmp.eq.s32.totalorder %v2293, 2
    %v2299 = vxor.u32 %v2289, 2147483648
    %v2300 = vsel %vm2298, %v2299, %v2290
    %v2301 = vsel %vm2294, %v2297, %v2300
    %v2302 = vsel %vm2291, nan, %v2301
    %v2303 = vand.u32 2147483647, %v294
    %vm2304 = vcmp.le.f32.partialorder %v2303, 0.7853982
    %vm2305 = vcmp.lt.s32.totalorder %v294, 0
    %v2306 = vand.u32 %v294, 2139095040
    %v2307 = vshrl.u32 %v2306, 23
    %v2308 = vsub.s32 %v2307, 127
    %v2309 = vand.u32 2147483647, %v294
    %v2310 = vand.u32 %v2309, 8388607
    %v2311 = vor.u32 %v2310, 8388608
    %v2312 = vsub.s32 0, %v2311
    %v2313 = vadd.s32 %v2308, 1
    %vm2314 = vcmp.gt.s32.totalorder %v2313, 0
    %v2315 = vsel %vm2314, %v2313, 0
    %v2316 = vshrl.u32 %v2315, 5
    %v2317 = vand.u32 %v2315, 31
    %v2318 = vsub.s32 32, %v2317
    %v2319 = vshrl.u32 683565275, %v2318
    %v2320 = vshll.u32 683565275, %v2317
    %v2321 = vshrl.u32 2475754826, %v2318
    %v2322 = vor.u32 %v2320, %v2321
    %v2323 = vshll.u32 2475754826, %v2317
    %v2324 = vshrl.u32 2131351028, %v2318
    %v2325 = vor.u32 %v2323, %v2324
    %v2326 = vshll.u32 2131351028, %v2317
    %v2327 = vshrl.u32 2102212464, %v2318
    %v2328 = vor.u32 %v2326, %v2327
    %v2329 = vshll.u32 2102212464, %v2317
    %v2330 = vshrl.u32 920167782, %v2318
    %v2331 = vor.u32 %v2329, %v2330
    %v2332 = vshll.u32 920167782, %v2317
    %v2333 = vshrl.u32 1326507024, %v2318
    %v2334 = vor.u32 %v2332, %v2333
    %vm2335 = vcmp.lt.s32.totalorder %v2316, 1
    %vm2336 = vcmp.lt.s32.totalorder %v2316, 2
    %vm2337 = vcmp.lt.s32.totalorder %v2316, 3
    %vm2338 = vcmp.lt.s32.totalorder %v2316, 4
    %v2339 = vsel %vm2335, %v2319, %v2322
    %v2340 = vsel %vm2338, %v2328, 2102212464
    %v2341 = vsel %vm2337, %v2325, %v2340
    %v2342 = vsel %vm2336, %v2339, %v2341
    %v2343 = vsel %vm2335, %v2322, %v2325
    %v2344 = vsel %vm2338, %v2331, 920167782
    %v2345 = vsel %vm2337, %v2328, %v2344
    %v2346 = vsel %vm2336, %v2343, %v2345
    %v2347 = vsel %vm2335, %v2325, %v2328
    %v2348 = vsel %vm2338, %v2334, 1326507024
    %v2349 = vsel %vm2337, %v2331, %v2348
    %v2350 = vsel %vm2336, %v2347, %v2349
    %v2351 = vshll.u32 %v2311, 8
    %v2352 = vmul.u32.u64.compose %v2351, %v2350
    %v2353 = vextract.low.u32 %v2352
    %v2354 = vextract.high.u32 %v2352
    %v2355 = vmul.u32.u64.compose %v2351, %v2346
    %v2356 = vextract.low.u32 %v2355
    %v2357 = vextract.high.u32 %v2355
    %v2358 = vmul.u32 %v2351, %v2342
    %v2359 = vadd.s32 %v2354, %v2356
    %vm2360 = vc.u32 %v2354, %v2356
    %v2361 = vadd.s32 %v2357, 1
    %v2362 = vsel %vm2360, %v2361, %v2357
    %v2363 = vadd.s32 %v2358, %v2362
    %v2364 = vadd.s32 %v2363, 536870912
    %v2365 = vshrl.u32 %v2364, 30
    %v2366 = vshll.u32 %v2365, 30
    %v2367 = vsub.s32 %v2363, %v2366
    %vm2368 = vcmp.lt.s32.totalorder %v2367, 0
    %v2369 = vsub.s32 0, %v2367
    %v2370 = vsel %vm2368, %v2369, %v2367
    %v2371 = vclz %v2370
    %v2372 = vsub.s32 %v2371, 2
    %vm2373 = vcmp.gt.s32.totalorder 0, %v2372
    %v2374 = vsel %vm2373, 0, %v2372
    %v2375 = vsub.s32 32, %v2374
    %v2376 = vshll.u32 %v2367, %v2374
    %v2377 = vshrl.u32 %v2359, %v2375
    %v2378 = vor.u32 %v2376, %v2377
    %v2379 = vsub.s32 4294967266, %v2374
    %v2380 = vadd.s32 %v2379, 127
    %v2381 = vshll.u32 %v2380, 23
    %v2382 = vor.u32 4788187, %v2381
    %v2383 = vand.u32 2147483647, %v2382
    %v2385 = vcvt.s32.f32 %v2378
    %v2386 = vmul.f32 %v2385, %v2383
    %v2387 = vxor.u32 %v2386, 2147483648
    %v2388 = vsel %vm2305, %v2387, %v2386
    %v2389 = vsub.s32 4, %v2365
    %v2390 = vsel %vm2305, %v2389, %v2365
    %v2391 = vsel %vm2304, %v294, %v2388
    %v2392 = vsel %vm2304, 0, %v2390
    %v2393 = vcosq.f32.pop %v2391
    %v2394 = vsinq.f32.pop %v2391
    %vm2395 = vweird.f32 %v294
    %v2396 = vadd.s32 %v2392, 3
    %v2397 = vand.u32 %v2396, 3
    %vm2398 = vcmp.lt.s32.totalorder %v2397, 2
    %vm2399 = vcmp.eq.s32.totalorder %v2397, 0
    %v2400 = vxor.u32 %v2394, 2147483648
    %v2401 = vsel %vm2399, %v2393, %v2400
    %vm2402 = vcmp.eq.s32.totalorder %v2397, 2
    %v2403 = vxor.u32 %v2393, 2147483648
    %v2404 = vsel %vm2402, %v2403, %v2394
    %v2405 = vsel %vm2398, %v2401, %v2404
    %v2406 = vsel %vm2395, nan, %v2405
    %v2407 = vand.u32 2147483647, %v299
    %vm2408 = vcmp.le.f32.partialorder %v2407, 0.7853982
    %vm2409 = vcmp.lt.s32.totalorder %v299, 0
    %v2410 = vand.u32 %v299, 2139095040
    %v2411 = vshrl.u32 %v2410, 23
    %v2412 = vsub.s32 %v2411, 127
    %v2413 = vand.u32 2147483647, %v299
    %v2414 = vand.u32 %v2413, 8388607
    %v2415 = vor.u32 %v2414, 8388608
    %v2416 = vsub.s32 0, %v2415
    %v2417 = vadd.s32 %v2412, 1
    %vm2418 = vcmp.gt.s32.totalorder %v2417, 0
    %v2419 = vsel %vm2418, %v2417, 0
    %v2420 = vshrl.u32 %v2419, 5
    %v2421 = vand.u32 %v2419, 31
    %v2422 = vsub.s32 32, %v2421
    %v2423 = vshrl.u32 683565275, %v2422
    %v2424 = vshll.u32 683565275, %v2421
    %v2425 = vshrl.u32 2475754826, %v2422
    %v2426 = vor.u32 %v2424, %v2425
    %v2427 = vshll.u32 2475754826, %v2421
    %v2428 = vshrl.u32 2131351028, %v2422
    %v2429 = vor.u32 %v2427, %v2428
    %v2430 = vshll.u32 2131351028, %v2421
    %v2431 = vshrl.u32 2102212464, %v2422
    %v2432 = vor.u32 %v2430, %v2431
    %v2433 = vshll.u32 2102212464, %v2421
    %v2434 = vshrl.u32 920167782, %v2422
    %v2435 = vor.u32 %v2433, %v2434
    %v2436 = vshll.u32 920167782, %v2421
    %v2437 = vshrl.u32 1326507024, %v2422
    %v2438 = vor.u32 %v2436, %v2437
    %vm2439 = vcmp.lt.s32.totalorder %v2420, 1
    %vm2440 = vcmp.lt.s32.totalorder %v2420, 2
    %vm2441 = vcmp.lt.s32.totalorder %v2420, 3
    %vm2442 = vcmp.lt.s32.totalorder %v2420, 4
    %v2443 = vsel %vm2439, %v2423, %v2426
    %v2444 = vsel %vm2442, %v2432, 2102212464
    %v2445 = vsel %vm2441, %v2429, %v2444
    %v2446 = vsel %vm2440, %v2443, %v2445
    %v2447 = vsel %vm2439, %v2426, %v2429
    %v2448 = vsel %vm2442, %v2435, 920167782
    %v2449 = vsel %vm2441, %v2432, %v2448
    %v2450 = vsel %vm2440, %v2447, %v2449
    %v2451 = vsel %vm2439, %v2429, %v2432
    %v2452 = vsel %vm2442, %v2438, 1326507024
    %v2453 = vsel %vm2441, %v2435, %v2452
    %v2454 = vsel %vm2440, %v2451, %v2453
    %v2455 = vshll.u32 %v2415, 8
    %v2456 = vmul.u32.u64.compose %v2455, %v2454
    %v2457 = vextract.low.u32 %v2456
    %v2458 = vextract.high.u32 %v2456
    %v2459 = vmul.u32.u64.compose %v2455, %v2450
    %v2460 = vextract.low.u32 %v2459
    %v2461 = vextract.high.u32 %v2459
    %v2462 = vmul.u32 %v2455, %v2446
    %v2463 = vadd.s32 %v2458, %v2460
    %vm2464 = vc.u32 %v2458, %v2460
    %v2465 = vadd.s32 %v2461, 1
    %v2466 = vsel %vm2464, %v2465, %v2461
    %v2467 = vadd.s32 %v2462, %v2466
    %v2468 = vadd.s32 %v2467, 536870912
    %v2469 = vshrl.u32 %v2468, 30
    %v2470 = vshll.u32 %v2469, 30
    %v2471 = vsub.s32 %v2467, %v2470
    %vm2472 = vcmp.lt.s32.totalorder %v2471, 0
    %v2473 = vsub.s32 0, %v2471
    %v2474 = vsel %vm2472, %v2473, %v2471
    %v2475 = vclz %v2474
    %v2476 = vsub.s32 %v2475, 2
    %vm2477 = vcmp.gt.s32.totalorder 0, %v2476
    %v2478 = vsel %vm2477, 0, %v2476
    %v2479 = vsub.s32 32, %v2478
    %v2480 = vshll.u32 %v2471, %v2478
    %v2481 = vshrl.u32 %v2463, %v2479
    %v2482 = vor.u32 %v2480, %v2481
    %v2483 = vsub.s32 4294967266, %v2478
    %v2484 = vadd.s32 %v2483, 127
    %v2485 = vshll.u32 %v2484, 23
    %v2486 = vor.u32 4788187, %v2485
    %v2487 = vand.u32 2147483647, %v2486
    %v2489 = vcvt.s32.f32 %v2482
    %v2490 = vmul.f32 %v2489, %v2487
    %v2491 = vxor.u32 %v2490, 2147483648
    %v2492 = vsel %vm2409, %v2491, %v2490
    %v2493 = vsub.s32 4, %v2469
    %v2494 = vsel %vm2409, %v2493, %v2469
    %v2495 = vsel %vm2408, %v299, %v2492
    %v2496 = vsel %vm2408, 0, %v2494
    %v2497 = vcosq.f32.pop %v2495
    %v2498 = vsinq.f32.pop %v2495
    %vm2499 = vweird.f32 %v299
    %v2500 = vadd.s32 %v2496, 3
    %v2501 = vand.u32 %v2500, 3
    %vm2502 = vcmp.lt.s32.totalorder %v2501, 2
    %vm2503 = vcmp.eq.s32.totalorder %v2501, 0
    %v2504 = vxor.u32 %v2498, 2147483648
    %v2505 = vsel %vm2503, %v2497, %v2504
    %vm2506 = vcmp.eq.s32.totalorder %v2501, 2
    %v2507 = vxor.u32 %v2497, 2147483648
    %v2508 = vsel %vm2506, %v2507, %v2498
    %v2509 = vsel %vm2502, %v2505, %v2508
    %v2510 = vsel %vm2499, nan, %v2509
    %v2511 = vand.u32 2147483647, %v304
    %vm2512 = vcmp.le.f32.partialorder %v2511, 0.7853982
    %vm2513 = vcmp.lt.s32.totalorder %v304, 0
    %v2514 = vand.u32 %v304, 2139095040
    %v2515 = vshrl.u32 %v2514, 23
    %v2516 = vsub.s32 %v2515, 127
    %v2517 = vand.u32 2147483647, %v304
    %v2518 = vand.u32 %v2517, 8388607
    %v2519 = vor.u32 %v2518, 8388608
    %v2520 = vsub.s32 0, %v2519
    %v2521 = vadd.s32 %v2516, 1
    %vm2522 = vcmp.gt.s32.totalorder %v2521, 0
    %v2523 = vsel %vm2522, %v2521, 0
    %v2524 = vshrl.u32 %v2523, 5
    %v2525 = vand.u32 %v2523, 31
    %v2526 = vsub.s32 32, %v2525
    %v2527 = vshrl.u32 683565275, %v2526
    %v2528 = vshll.u32 683565275, %v2525
    %v2529 = vshrl.u32 2475754826, %v2526
    %v2530 = vor.u32 %v2528, %v2529
    %v2531 = vshll.u32 2475754826, %v2525
    %v2532 = vshrl.u32 2131351028, %v2526
    %v2533 = vor.u32 %v2531, %v2532
    %v2534 = vshll.u32 2131351028, %v2525
    %v2535 = vshrl.u32 2102212464, %v2526
    %v2536 = vor.u32 %v2534, %v2535
    %v2537 = vshll.u32 2102212464, %v2525
    %v2538 = vshrl.u32 920167782, %v2526
    %v2539 = vor.u32 %v2537, %v2538
    %v2540 = vshll.u32 920167782, %v2525
    %v2541 = vshrl.u32 1326507024, %v2526
    %v2542 = vor.u32 %v2540, %v2541
    %vm2543 = vcmp.lt.s32.totalorder %v2524, 1
    %vm2544 = vcmp.lt.s32.totalorder %v2524, 2
    %vm2545 = vcmp.lt.s32.totalorder %v2524, 3
    %vm2546 = vcmp.lt.s32.totalorder %v2524, 4
    %v2547 = vsel %vm2543, %v2527, %v2530
    %v2548 = vsel %vm2546, %v2536, 2102212464
    %v2549 = vsel %vm2545, %v2533, %v2548
    %v2550 = vsel %vm2544, %v2547, %v2549
    %v2551 = vsel %vm2543, %v2530, %v2533
    %v2552 = vsel %vm2546, %v2539, 920167782
    %v2553 = vsel %vm2545, %v2536, %v2552
    %v2554 = vsel %vm2544, %v2551, %v2553
    %v2555 = vsel %vm2543, %v2533, %v2536
    %v2556 = vsel %vm2546, %v2542, 1326507024
    %v2557 = vsel %vm2545, %v2539, %v2556
    %v2558 = vsel %vm2544, %v2555, %v2557
    %v2559 = vshll.u32 %v2519, 8
    %v2560 = vmul.u32.u64.compose %v2559, %v2558
    %v2561 = vextract.low.u32 %v2560
    %v2562 = vextract.high.u32 %v2560
    %v2563 = vmul.u32.u64.compose %v2559, %v2554
    %v2564 = vextract.low.u32 %v2563
    %v2565 = vextract.high.u32 %v2563
    %v2566 = vmul.u32 %v2559, %v2550
    %v2567 = vadd.s32 %v2562, %v2564
    %vm2568 = vc.u32 %v2562, %v2564
    %v2569 = vadd.s32 %v2565, 1
    %v2570 = vsel %vm2568, %v2569, %v2565
    %v2571 = vadd.s32 %v2566, %v2570
    %v2572 = vadd.s32 %v2571, 536870912
    %v2573 = vshrl.u32 %v2572, 30
    %v2574 = vshll.u32 %v2573, 30
    %v2575 = vsub.s32 %v2571, %v2574
    %vm2576 = vcmp.lt.s32.totalorder %v2575, 0
    %v2577 = vsub.s32 0, %v2575
    %v2578 = vsel %vm2576, %v2577, %v2575
    %v2579 = vclz %v2578
    %v2580 = vsub.s32 %v2579, 2
    %vm2581 = vcmp.gt.s32.totalorder 0, %v2580
    %v2582 = vsel %vm2581, 0, %v2580
    %v2583 = vsub.s32 32, %v2582
    %v2584 = vshll.u32 %v2575, %v2582
    %v2585 = vshrl.u32 %v2567, %v2583
    %v2586 = vor.u32 %v2584, %v2585
    %v2587 = vsub.s32 4294967266, %v2582
    %v2588 = vadd.s32 %v2587, 127
    %v2589 = vshll.u32 %v2588, 23
    %v2590 = vor.u32 4788187, %v2589
    %v2591 = vand.u32 2147483647, %v2590
    %v2593 = vcvt.s32.f32 %v2586
    %v2594 = vmul.f32 %v2593, %v2591
    %v2595 = vxor.u32 %v2594, 2147483648
    %v2596 = vsel %vm2513, %v2595, %v2594
    %v2597 = vsub.s32 4, %v2573
    %v2598 = vsel %vm2513, %v2597, %v2573
    %v2599 = vsel %vm2512, %v304, %v2596
    %v2600 = vsel %vm2512, 0, %v2598
    %v2601 = vcosq.f32.pop %v2599
    %v2602 = vsinq.f32.pop %v2599
    %vm2603 = vweird.f32 %v304
    %v2604 = vadd.s32 %v2600, 3
    %v2605 = vand.u32 %v2604, 3
    %vm2606 = vcmp.lt.s32.totalorder %v2605, 2
    %vm2607 = vcmp.eq.s32.totalorder %v2605, 0
    %v2608 = vxor.u32 %v2602, 2147483648
    %v2609 = vsel %vm2607, %v2601, %v2608
    %vm2610 = vcmp.eq.s32.totalorder %v2605, 2
    %v2611 = vxor.u32 %v2601, 2147483648
    %v2612 = vsel %vm2610, %v2611, %v2602
    %v2613 = vsel %vm2606, %v2609, %v2612
    %v2614 = vsel %vm2603, nan, %v2613
    %v2615 = vand.u32 2147483647, %v309
    %vm2616 = vcmp.le.f32.partialorder %v2615, 0.7853982
    %vm2617 = vcmp.lt.s32.totalorder %v309, 0
    %v2618 = vand.u32 %v309, 2139095040
    %v2619 = vshrl.u32 %v2618, 23
    %v2620 = vsub.s32 %v2619, 127
    %v2621 = vand.u32 2147483647, %v309
    %v2622 = vand.u32 %v2621, 8388607
    %v2623 = vor.u32 %v2622, 8388608
    %v2624 = vsub.s32 0, %v2623
    %v2625 = vadd.s32 %v2620, 1
    %vm2626 = vcmp.gt.s32.totalorder %v2625, 0
    %v2627 = vsel %vm2626, %v2625, 0
    %v2628 = vshrl.u32 %v2627, 5
    %v2629 = vand.u32 %v2627, 31
    %v2630 = vsub.s32 32, %v2629
    %v2631 = vshrl.u32 683565275, %v2630
    %v2632 = vshll.u32 683565275, %v2629
    %v2633 = vshrl.u32 2475754826, %v2630
    %v2634 = vor.u32 %v2632, %v2633
    %v2635 = vshll.u32 2475754826, %v2629
    %v2636 = vshrl.u32 2131351028, %v2630
    %v2637 = vor.u32 %v2635, %v2636
    %v2638 = vshll.u32 2131351028, %v2629
    %v2639 = vshrl.u32 2102212464, %v2630
    %v2640 = vor.u32 %v2638, %v2639
    %v2641 = vshll.u32 2102212464, %v2629
    %v2642 = vshrl.u32 920167782, %v2630
    %v2643 = vor.u32 %v2641, %v2642
    %v2644 = vshll.u32 920167782, %v2629
    %v2645 = vshrl.u32 1326507024, %v2630
    %v2646 = vor.u32 %v2644, %v2645
    %vm2647 = vcmp.lt.s32.totalorder %v2628, 1
    %vm2648 = vcmp.lt.s32.totalorder %v2628, 2
    %vm2649 = vcmp.lt.s32.totalorder %v2628, 3
    %vm2650 = vcmp.lt.s32.totalorder %v2628, 4
    %v2651 = vsel %vm2647, %v2631, %v2634
    %v2652 = vsel %vm2650, %v2640, 2102212464
    %v2653 = vsel %vm2649, %v2637, %v2652
    %v2654 = vsel %vm2648, %v2651, %v2653
    %v2655 = vsel %vm2647, %v2634, %v2637
    %v2656 = vsel %vm2650, %v2643, 920167782
    %v2657 = vsel %vm2649, %v2640, %v2656
    %v2658 = vsel %vm2648, %v2655, %v2657
    %v2659 = vsel %vm2647, %v2637, %v2640
    %v2660 = vsel %vm2650, %v2646, 1326507024
    %v2661 = vsel %vm2649, %v2643, %v2660
    %v2662 = vsel %vm2648, %v2659, %v2661
    %v2663 = vshll.u32 %v2623, 8
    %v2664 = vmul.u32.u64.compose %v2663, %v2662
    %v2665 = vextract.low.u32 %v2664
    %v2666 = vextract.high.u32 %v2664
    %v2667 = vmul.u32.u64.compose %v2663, %v2658
    %v2668 = vextract.low.u32 %v2667
    %v2669 = vextract.high.u32 %v2667
    %v2670 = vmul.u32 %v2663, %v2654
    %v2671 = vadd.s32 %v2666, %v2668
    %vm2672 = vc.u32 %v2666, %v2668
    %v2673 = vadd.s32 %v2669, 1
    %v2674 = vsel %vm2672, %v2673, %v2669
    %v2675 = vadd.s32 %v2670, %v2674
    %v2676 = vadd.s32 %v2675, 536870912
    %v2677 = vshrl.u32 %v2676, 30
    %v2678 = vshll.u32 %v2677, 30
    %v2679 = vsub.s32 %v2675, %v2678
    %vm2680 = vcmp.lt.s32.totalorder %v2679, 0
    %v2681 = vsub.s32 0, %v2679
    %v2682 = vsel %vm2680, %v2681, %v2679
    %v2683 = vclz %v2682
    %v2684 = vsub.s32 %v2683, 2
    %vm2685 = vcmp.gt.s32.totalorder 0, %v2684
    %v2686 = vsel %vm2685, 0, %v2684
    %v2687 = vsub.s32 32, %v2686
    %v2688 = vshll.u32 %v2679, %v2686
    %v2689 = vshrl.u32 %v2671, %v2687
    %v2690 = vor.u32 %v2688, %v2689
    %v2691 = vsub.s32 4294967266, %v2686
    %v2692 = vadd.s32 %v2691, 127
    %v2693 = vshll.u32 %v2692, 23
    %v2694 = vor.u32 4788187, %v2693
    %v2695 = vand.u32 2147483647, %v2694
    %v2697 = vcvt.s32.f32 %v2690
    %v2698 = vmul.f32 %v2697, %v2695
    %v2699 = vxor.u32 %v2698, 2147483648
    %v2700 = vsel %vm2617, %v2699, %v2698
    %v2701 = vsub.s32 4, %v2677
    %v2702 = vsel %vm2617, %v2701, %v2677
    %v2703 = vsel %vm2616, %v309, %v2700
    %v2704 = vsel %vm2616, 0, %v2702
    %v2705 = vcosq.f32.pop %v2703
    %v2706 = vsinq.f32.pop %v2703
    %vm2707 = vweird.f32 %v309
    %v2708 = vadd.s32 %v2704, 3
    %v2709 = vand.u32 %v2708, 3
    %vm2710 = vcmp.lt.s32.totalorder %v2709, 2
    %vm2711 = vcmp.eq.s32.totalorder %v2709, 0
    %v2712 = vxor.u32 %v2706, 2147483648
    %v2713 = vsel %vm2711, %v2705, %v2712
    %vm2714 = vcmp.eq.s32.totalorder %v2709, 2
    %v2715 = vxor.u32 %v2705, 2147483648
    %v2716 = vsel %vm2714, %v2715, %v2706
    %v2717 = vsel %vm2710, %v2713, %v2716
    %v2718 = vsel %vm2707, nan, %v2717
    %v2719 = vand.u32 2147483647, %v314
    %vm2720 = vcmp.le.f32.partialorder %v2719, 0.7853982
    %vm2721 = vcmp.lt.s32.totalorder %v314, 0
    %v2722 = vand.u32 %v314, 2139095040
    %v2723 = vshrl.u32 %v2722, 23
    %v2724 = vsub.s32 %v2723, 127
    %v2725 = vand.u32 2147483647, %v314
    %v2726 = vand.u32 %v2725, 8388607
    %v2727 = vor.u32 %v2726, 8388608
    %v2728 = vsub.s32 0, %v2727
    %v2729 = vadd.s32 %v2724, 1
    %vm2730 = vcmp.gt.s32.totalorder %v2729, 0
    %v2731 = vsel %vm2730, %v2729, 0
    %v2732 = vshrl.u32 %v2731, 5
    %v2733 = vand.u32 %v2731, 31
    %v2734 = vsub.s32 32, %v2733
    %v2735 = vshrl.u32 683565275, %v2734
    %v2736 = vshll.u32 683565275, %v2733
    %v2737 = vshrl.u32 2475754826, %v2734
    %v2738 = vor.u32 %v2736, %v2737
    %v2739 = vshll.u32 2475754826, %v2733
    %v2740 = vshrl.u32 2131351028, %v2734
    %v2741 = vor.u32 %v2739, %v2740
    %v2742 = vshll.u32 2131351028, %v2733
    %v2743 = vshrl.u32 2102212464, %v2734
    %v2744 = vor.u32 %v2742, %v2743
    %v2745 = vshll.u32 2102212464, %v2733
    %v2746 = vshrl.u32 920167782, %v2734
    %v2747 = vor.u32 %v2745, %v2746
    %v2748 = vshll.u32 920167782, %v2733
    %v2749 = vshrl.u32 1326507024, %v2734
    %v2750 = vor.u32 %v2748, %v2749
    %vm2751 = vcmp.lt.s32.totalorder %v2732, 1
    %vm2752 = vcmp.lt.s32.totalorder %v2732, 2
    %vm2753 = vcmp.lt.s32.totalorder %v2732, 3
    %vm2754 = vcmp.lt.s32.totalorder %v2732, 4
    %v2755 = vsel %vm2751, %v2735, %v2738
    %v2756 = vsel %vm2754, %v2744, 2102212464
    %v2757 = vsel %vm2753, %v2741, %v2756
    %v2758 = vsel %vm2752, %v2755, %v2757
    %v2759 = vsel %vm2751, %v2738, %v2741
    %v2760 = vsel %vm2754, %v2747, 920167782
    %v2761 = vsel %vm2753, %v2744, %v2760
    %v2762 = vsel %vm2752, %v2759, %v2761
    %v2763 = vsel %vm2751, %v2741, %v2744
    %v2764 = vsel %vm2754, %v2750, 1326507024
    %v2765 = vsel %vm2753, %v2747, %v2764
    %v2766 = vsel %vm2752, %v2763, %v2765
    %v2767 = vshll.u32 %v2727, 8
    %v2768 = vmul.u32.u64.compose %v2767, %v2766
    %v2769 = vextract.low.u32 %v2768
    %v2770 = vextract.high.u32 %v2768
    %v2771 = vmul.u32.u64.compose %v2767, %v2762
    %v2772 = vextract.low.u32 %v2771
    %v2773 = vextract.high.u32 %v2771
    %v2774 = vmul.u32 %v2767, %v2758
    %v2775 = vadd.s32 %v2770, %v2772
    %vm2776 = vc.u32 %v2770, %v2772
    %v2777 = vadd.s32 %v2773, 1
    %v2778 = vsel %vm2776, %v2777, %v2773
    %v2779 = vadd.s32 %v2774, %v2778
    %v2780 = vadd.s32 %v2779, 536870912
    %v2781 = vshrl.u32 %v2780, 30
    %v2782 = vshll.u32 %v2781, 30
    %v2783 = vsub.s32 %v2779, %v2782
    %vm2784 = vcmp.lt.s32.totalorder %v2783, 0
    %v2785 = vsub.s32 0, %v2783
    %v2786 = vsel %vm2784, %v2785, %v2783
    %v2787 = vclz %v2786
    %v2788 = vsub.s32 %v2787, 2
    %vm2789 = vcmp.gt.s32.totalorder 0, %v2788
    %v2790 = vsel %vm2789, 0, %v2788
    %v2791 = vsub.s32 32, %v2790
    %v2792 = vshll.u32 %v2783, %v2790
    %v2793 = vshrl.u32 %v2775, %v2791
    %v2794 = vor.u32 %v2792, %v2793
    %v2795 = vsub.s32 4294967266, %v2790
    %v2796 = vadd.s32 %v2795, 127
    %v2797 = vshll.u32 %v2796, 23
    %v2798 = vor.u32 4788187, %v2797
    %v2799 = vand.u32 2147483647, %v2798
    %v2801 = vcvt.s32.f32 %v2794
    %v2802 = vmul.f32 %v2801, %v2799
    %v2803 = vxor.u32 %v2802, 2147483648
    %v2804 = vsel %vm2721, %v2803, %v2802
    %v2805 = vsub.s32 4, %v2781
    %v2806 = vsel %vm2721, %v2805, %v2781
    %v2807 = vsel %vm2720, %v314, %v2804
    %v2808 = vsel %vm2720, 0, %v2806
    %v2809 = vcosq.f32.pop %v2807
    %v2810 = vsinq.f32.pop %v2807
    %vm2811 = vweird.f32 %v314
    %v2812 = vadd.s32 %v2808, 3
    %v2813 = vand.u32 %v2812, 3
    %vm2814 = vcmp.lt.s32.totalorder %v2813, 2
    %vm2815 = vcmp.eq.s32.totalorder %v2813, 0
    %v2816 = vxor.u32 %v2810, 2147483648
    %v2817 = vsel %vm2815, %v2809, %v2816
    %vm2818 = vcmp.eq.s32.totalorder %v2813, 2
    %v2819 = vxor.u32 %v2809, 2147483648
    %v2820 = vsel %vm2818, %v2819, %v2810
    %v2821 = vsel %vm2814, %v2817, %v2820
    %v2822 = vsel %vm2811, nan, %v2821
    %v2823 = vand.u32 2147483647, %v319
    %vm2824 = vcmp.le.f32.partialorder %v2823, 0.7853982
    %vm2825 = vcmp.lt.s32.totalorder %v319, 0
    %v2826 = vand.u32 %v319, 2139095040
    %v2827 = vshrl.u32 %v2826, 23
    %v2828 = vsub.s32 %v2827, 127
    %v2829 = vand.u32 2147483647, %v319
    %v2830 = vand.u32 %v2829, 8388607
    %v2831 = vor.u32 %v2830, 8388608
    %v2832 = vsub.s32 0, %v2831
    %v2833 = vadd.s32 %v2828, 1
    %vm2834 = vcmp.gt.s32.totalorder %v2833, 0
    %v2835 = vsel %vm2834, %v2833, 0
    %v2836 = vshrl.u32 %v2835, 5
    %v2837 = vand.u32 %v2835, 31
    %v2838 = vsub.s32 32, %v2837
    %v2839 = vshrl.u32 683565275, %v2838
    %v2840 = vshll.u32 683565275, %v2837
    %v2841 = vshrl.u32 2475754826, %v2838
    %v2842 = vor.u32 %v2840, %v2841
    %v2843 = vshll.u32 2475754826, %v2837
    %v2844 = vshrl.u32 2131351028, %v2838
    %v2845 = vor.u32 %v2843, %v2844
    %v2846 = vshll.u32 2131351028, %v2837
    %v2847 = vshrl.u32 2102212464, %v2838
    %v2848 = vor.u32 %v2846, %v2847
    %v2849 = vshll.u32 2102212464, %v2837
    %v2850 = vshrl.u32 920167782, %v2838
    %v2851 = vor.u32 %v2849, %v2850
    %v2852 = vshll.u32 920167782, %v2837
    %v2853 = vshrl.u32 1326507024, %v2838
    %v2854 = vor.u32 %v2852, %v2853
    %vm2855 = vcmp.lt.s32.totalorder %v2836, 1
    %vm2856 = vcmp.lt.s32.totalorder %v2836, 2
    %vm2857 = vcmp.lt.s32.totalorder %v2836, 3
    %vm2858 = vcmp.lt.s32.totalorder %v2836, 4
    %v2859 = vsel %vm2855, %v2839, %v2842
    %v2860 = vsel %vm2858, %v2848, 2102212464
    %v2861 = vsel %vm2857, %v2845, %v2860
    %v2862 = vsel %vm2856, %v2859, %v2861
    %v2863 = vsel %vm2855, %v2842, %v2845
    %v2864 = vsel %vm2858, %v2851, 920167782
    %v2865 = vsel %vm2857, %v2848, %v2864
    %v2866 = vsel %vm2856, %v2863, %v2865
    %v2867 = vsel %vm2855, %v2845, %v2848
    %v2868 = vsel %vm2858, %v2854, 1326507024
    %v2869 = vsel %vm2857, %v2851, %v2868
    %v2870 = vsel %vm2856, %v2867, %v2869
    %v2871 = vshll.u32 %v2831, 8
    %v2872 = vmul.u32.u64.compose %v2871, %v2870
    %v2873 = vextract.low.u32 %v2872
    %v2874 = vextract.high.u32 %v2872
    %v2875 = vmul.u32.u64.compose %v2871, %v2866
    %v2876 = vextract.low.u32 %v2875
    %v2877 = vextract.high.u32 %v2875
    %v2878 = vmul.u32 %v2871, %v2862
    %v2879 = vadd.s32 %v2874, %v2876
    %vm2880 = vc.u32 %v2874, %v2876
    %v2881 = vadd.s32 %v2877, 1
    %v2882 = vsel %vm2880, %v2881, %v2877
    %v2883 = vadd.s32 %v2878, %v2882
    %v2884 = vadd.s32 %v2883, 536870912
    %v2885 = vshrl.u32 %v2884, 30
    %v2886 = vshll.u32 %v2885, 30
    %v2887 = vsub.s32 %v2883, %v2886
    %vm2888 = vcmp.lt.s32.totalorder %v2887, 0
    %v2889 = vsub.s32 0, %v2887
    %v2890 = vsel %vm2888, %v2889, %v2887
    %v2891 = vclz %v2890
    %v2892 = vsub.s32 %v2891, 2
    %vm2893 = vcmp.gt.s32.totalorder 0, %v2892
    %v2894 = vsel %vm2893, 0, %v2892
    %v2895 = vsub.s32 32, %v2894
    %v2896 = vshll.u32 %v2887, %v2894
    %v2897 = vshrl.u32 %v2879, %v2895
    %v2898 = vor.u32 %v2896, %v2897
    %v2899 = vsub.s32 4294967266, %v2894
    %v2900 = vadd.s32 %v2899, 127
    %v2901 = vshll.u32 %v2900, 23
    %v2902 = vor.u32 4788187, %v2901
    %v2903 = vand.u32 2147483647, %v2902
    %v2905 = vcvt.s32.f32 %v2898
    %v2906 = vmul.f32 %v2905, %v2903
    %v2907 = vxor.u32 %v2906, 2147483648
    %v2908 = vsel %vm2825, %v2907, %v2906
    %v2909 = vsub.s32 4, %v2885
    %v2910 = vsel %vm2825, %v2909, %v2885
    %v2911 = vsel %vm2824, %v319, %v2908
    %v2912 = vsel %vm2824, 0, %v2910
    %v2913 = vcosq.f32.pop %v2911
    %v2914 = vsinq.f32.pop %v2911
    %vm2915 = vweird.f32 %v319
    %v2916 = vadd.s32 %v2912, 3
    %v2917 = vand.u32 %v2916, 3
    %vm2918 = vcmp.lt.s32.totalorder %v2917, 2
    %vm2919 = vcmp.eq.s32.totalorder %v2917, 0
    %v2920 = vxor.u32 %v2914, 2147483648
    %v2921 = vsel %vm2919, %v2913, %v2920
    %vm2922 = vcmp.eq.s32.totalorder %v2917, 2
    %v2923 = vxor.u32 %v2913, 2147483648
    %v2924 = vsel %vm2922, %v2923, %v2914
    %v2925 = vsel %vm2918, %v2921, %v2924
    %v2926 = vsel %vm2915, nan, %v2925
    %v2927 = vand.u32 2147483647, %v324
    %vm2928 = vcmp.le.f32.partialorder %v2927, 0.7853982
    %vm2929 = vcmp.lt.s32.totalorder %v324, 0
    %v2930 = vand.u32 %v324, 2139095040
    %v2931 = vshrl.u32 %v2930, 23
    %v2932 = vsub.s32 %v2931, 127
    %v2933 = vand.u32 2147483647, %v324
    %v2934 = vand.u32 %v2933, 8388607
    %v2935 = vor.u32 %v2934, 8388608
    %v2936 = vsub.s32 0, %v2935
    %v2937 = vadd.s32 %v2932, 1
    %vm2938 = vcmp.gt.s32.totalorder %v2937, 0
    %v2939 = vsel %vm2938, %v2937, 0
    %v2940 = vshrl.u32 %v2939, 5
    %v2941 = vand.u32 %v2939, 31
    %v2942 = vsub.s32 32, %v2941
    %v2943 = vshrl.u32 683565275, %v2942
    %v2944 = vshll.u32 683565275, %v2941
    %v2945 = vshrl.u32 2475754826, %v2942
    %v2946 = vor.u32 %v2944, %v2945
    %v2947 = vshll.u32 2475754826, %v2941
    %v2948 = vshrl.u32 2131351028, %v2942
    %v2949 = vor.u32 %v2947, %v2948
    %v2950 = vshll.u32 2131351028, %v2941
    %v2951 = vshrl.u32 2102212464, %v2942
    %v2952 = vor.u32 %v2950, %v2951
    %v2953 = vshll.u32 2102212464, %v2941
    %v2954 = vshrl.u32 920167782, %v2942
    %v2955 = vor.u32 %v2953, %v2954
    %v2956 = vshll.u32 920167782, %v2941
    %v2957 = vshrl.u32 1326507024, %v2942
    %v2958 = vor.u32 %v2956, %v2957
    %vm2959 = vcmp.lt.s32.totalorder %v2940, 1
    %vm2960 = vcmp.lt.s32.totalorder %v2940, 2
    %vm2961 = vcmp.lt.s32.totalorder %v2940, 3
    %vm2962 = vcmp.lt.s32.totalorder %v2940, 4
    %v2963 = vsel %vm2959, %v2943, %v2946
    %v2964 = vsel %vm2962, %v2952, 2102212464
    %v2965 = vsel %vm2961, %v2949, %v2964
    %v2966 = vsel %vm2960, %v2963, %v2965
    %v2967 = vsel %vm2959, %v2946, %v2949
    %v2968 = vsel %vm2962, %v2955, 920167782
    %v2969 = vsel %vm2961, %v2952, %v2968
    %v2970 = vsel %vm2960, %v2967, %v2969
    %v2971 = vsel %vm2959, %v2949, %v2952
    %v2972 = vsel %vm2962, %v2958, 1326507024
    %v2973 = vsel %vm2961, %v2955, %v2972
    %v2974 = vsel %vm2960, %v2971, %v2973
    %v2975 = vshll.u32 %v2935, 8
    %v2976 = vmul.u32.u64.compose %v2975, %v2974
    %v2977 = vextract.low.u32 %v2976
    %v2978 = vextract.high.u32 %v2976
    %v2979 = vmul.u32.u64.compose %v2975, %v2970
    %v2980 = vextract.low.u32 %v2979
    %v2981 = vextract.high.u32 %v2979
    %v2982 = vmul.u32 %v2975, %v2966
    %v2983 = vadd.s32 %v2978, %v2980
    %vm2984 = vc.u32 %v2978, %v2980
    %v2985 = vadd.s32 %v2981, 1
    %v2986 = vsel %vm2984, %v2985, %v2981
    %v2987 = vadd.s32 %v2982, %v2986
    %v2988 = vadd.s32 %v2987, 536870912
    %v2989 = vshrl.u32 %v2988, 30
    %v2990 = vshll.u32 %v2989, 30
    %v2991 = vsub.s32 %v2987, %v2990
    %vm2992 = vcmp.lt.s32.totalorder %v2991, 0
    %v2993 = vsub.s32 0, %v2991
    %v2994 = vsel %vm2992, %v2993, %v2991
    %v2995 = vclz %v2994
    %v2996 = vsub.s32 %v2995, 2
    %vm2997 = vcmp.gt.s32.totalorder 0, %v2996
    %v2998 = vsel %vm2997, 0, %v2996
    %v2999 = vsub.s32 32, %v2998
    %v3000 = vshll.u32 %v2991, %v2998
    %v3001 = vshrl.u32 %v2983, %v2999
    %v3002 = vor.u32 %v3000, %v3001
    %v3003 = vsub.s32 4294967266, %v2998
    %v3004 = vadd.s32 %v3003, 127
    %v3005 = vshll.u32 %v3004, 23
    %v3006 = vor.u32 4788187, %v3005
    %v3007 = vand.u32 2147483647, %v3006
    %v3009 = vcvt.s32.f32 %v3002
    %v3010 = vmul.f32 %v3009, %v3007
    %v3011 = vxor.u32 %v3010, 2147483648
    %v3012 = vsel %vm2929, %v3011, %v3010
    %v3013 = vsub.s32 4, %v2989
    %v3014 = vsel %vm2929, %v3013, %v2989
    %v3015 = vsel %vm2928, %v324, %v3012
    %v3016 = vsel %vm2928, 0, %v3014
    %v3017 = vcosq.f32.pop %v3015
    %v3018 = vsinq.f32.pop %v3015
    %vm3019 = vweird.f32 %v324
    %v3020 = vadd.s32 %v3016, 3
    %v3021 = vand.u32 %v3020, 3
    %vm3022 = vcmp.lt.s32.totalorder %v3021, 2
    %vm3023 = vcmp.eq.s32.totalorder %v3021, 0
    %v3024 = vxor.u32 %v3018, 2147483648
    %v3025 = vsel %vm3023, %v3017, %v3024
    %vm3026 = vcmp.eq.s32.totalorder %v3021, 2
    %v3027 = vxor.u32 %v3017, 2147483648
    %v3028 = vsel %vm3026, %v3027, %v3018
    %v3029 = vsel %vm3022, %v3025, %v3028
    %v3030 = vsel %vm3019, nan, %v3029
    %3031 = vst [vmem:[#allocation2] sm:$0xff] %v430
    %3032 = vst [vmem:[#allocation2 + $0x8] sm:$0xff] %v534
    %3033 = vst [vmem:[#allocation2 + $0x10] sm:$0xff] %v638
    %3034 = vst [vmem:[#allocation2 + $0x18] sm:$0xff] %v742
    %3035 = vst [vmem:[#allocation2 + $0x20] sm:$0xff] %v846
    %3036 = vst [vmem:[#allocation2 + $0x28] sm:$0xff] %v950
    %3037 = vst [vmem:[#allocation2 + $0x30] sm:$0xff] %v1054
    %3038 = vst [vmem:[#allocation2 + $0x38] sm:$0xff] %v1158
    %3039 = vst [vmem:[#allocation2 + $0x40] sm:$0xff] %v1262
    %3040 = vst [vmem:[#allocation2 + $0x48] sm:$0xff] %v1366
    %3041 = vst [vmem:[#allocation2 + $0x50] sm:$0xff] %v1470
    %3042 = vst [vmem:[#allocation2 + $0x58] sm:$0xff] %v1574
    %3043 = vst [vmem:[#allocation2 + $0x60] sm:$0xff] %v1678
    %3044 = vst [vmem:[#allocation2 + $0x68] sm:$0xff] %v1782
    %3045 = vst [vmem:[#allocation2 + $0x70] sm:$0xff] %v1886
    %3046 = vst [vmem:[#allocation2 + $0x78] sm:$0xff] %v1990
    %3047 = vst [vmem:[#allocation2 + $0x80] sm:$0xff] %v2094
    %3048 = vst [vmem:[#allocation2 + $0x88] sm:$0xff] %v2198
    %3049 = vst [vmem:[#allocation2 + $0x90] sm:$0xff] %v2302
    %3050 = vst [vmem:[#allocation2 + $0x98] sm:$0xff] %v2406
    %3051 = vst [vmem:[#allocation2 + $0xa0] sm:$0xff] %v2510
    %3052 = vst [vmem:[#allocation2 + $0xa8] sm:$0xff] %v2614
    %3053 = vst [vmem:[#allocation2 + $0xb0] sm:$0xff] %v2718
    %3054 = vst [vmem:[#allocation2 + $0xb8] sm:$0xff] %v2822
    %3055 = vst [vmem:[#allocation2 + $0xc0] sm:$0xff] %v2926
    %3056 = vst [vmem:[#allocation2 + $0xc8] sm:$0xff] %v3030
    // Predicated region
    $region14: #{spatial_temporal_fourier_embedding.1} parent=1 // pred_check
      _
    $region15: #{spatial_temporal_fourier_embedding.1} parent=1 // pred_check_branch
      %3058 = sbr.rel (0) target = $region17
    $region16: #{spatial_temporal_fourier_embedding.1} parent=1 // pred_region
      %s3060 = ssub.s32 3328, 3200
      %3061 = vsyncadd [#allocation3], %s3060
      %s3062 = sshll.u32 [#allocation2], 4
      %s3063 = int_to_ptr.vmem [resolvable:$true] %s3062
      %3068 = dma.vmem_to_hbm [thread:$0]  %s3063, 3200, %s3, [#allocation3], 128, 128, 8
    $region17: #{spatial_temporal_fourier_embedding.1} parent=1 // pred_fallthru
      _
    // Predicated region
    $region18: #{spatial_temporal_fourier_embedding.1} parent=1 // pred_check
      _
    $region19: #{spatial_temporal_fourier_embedding.1} parent=1 // pred_check_branch
      %3070 = sbr.rel (0) target = $region21
    $region20: #{spatial_temporal_fourier_embedding.1} parent=1 // pred_region
      %3071 = dma.done [#allocation3], 3328
    $region21: #{spatial_temporal_fourier_embedding.1} parent=1 // pred_fallthru
      _
    %3072 = vsyncpa [#allocation3], 1

</llo_original>
